<compile_context>
chip_gen: v6e
topology: v6e:2x2x1
jax: 0.10.0
libtpu: 0.0.40
codegen_flags: <defaults>
</compile_context>

<pallas_src>
import functools

import jax
import jax.numpy as jnp
from jax import lax
from jax.experimental import pallas as pl
from jax.experimental.pallas import tpu as pltpu

_LANES = 128
_SUBLANES = 8


def _round_up(x, m):
    return -(-x // m) * m


def _sepconv_kernel(*refs, K, TH, WOP, has_halo, mxu_dtype):
    """One (batch, row-band) tile per grid step.

    refs (has_halo=True):  xm(1,TH,Wpk,Cin), xh(1,HB,Wpk,Cin), dw(K,K,Cin),
                           pw(Cin,Coutp), o(1,TH,WOP,Coutp), acc(TH,Wpk,Cin) f32
    refs (has_halo=False): xm(1,TH+K-1,Wpk,Cin), dw, pw, o, acc
    """
    if has_halo:
        xm_ref, xh_ref, dw_ref, pw_ref, o_ref, acc_ref = refs
    else:
        xm_ref, dw_ref, pw_ref, o_ref, acc_ref = refs

    cin = xm_ref.shape[-1]
    wpk = xm_ref.shape[-2]

    dww = dw_ref[...].astype(jnp.float32)               # (K, K, Cin), loaded once per band
    xm = xm_ref[0].astype(jnp.float32)                  # (rows, Wpk, Cin), f32 on the VPU

    # ---- depthwise KxK accumulation (VPU mul/add, XLU width rolls) ----
    for kx in range(K):
        # Width tap kx: one XLU roll instead of an unaligned sublane slice.
        # Columns >= WOP hold wrapped junk and are sliced off before the matmul.
        xr = xm if kx == 0 else pltpu.roll(xm, wpk - kx, axis=1)
        for ky in range(K):
            w = dww[ky, kx].reshape(1, 1, cin)           # broadcast over rows/sublanes
            first = (kx == 0 and ky == 0)
            if has_halo:
                if ky == 0:
                    if first:
                        acc_ref[...] = xr * w
                    else:
                        acc_ref[...] += xr * w
                else:
                    # output rows [0, TH-ky) read band rows [ky, TH)
                    acc_ref[: TH - ky] += xr[ky:] * w
            else:
                contrib = xr[ky: ky + TH] * w
                if first:
                    acc_ref[...] = contrib
                else:
                    acc_ref[...] += contrib

    if has_halo and K > 1:
        # Halo: the K-1 rows below the band only touch the last K-1 output rows.
        xh = xh_ref[0, : K - 1].astype(jnp.float32)      # (K-1, Wpk, Cin)
        for kx in range(K):
            hr = xh if kx == 0 else pltpu.roll(xh, wpk - kx, axis=1)
            for ky in range(1, K):
                w = dww[ky, kx].reshape(1, 1, cin)
                acc_ref[TH - ky:] += hr[:ky] * w

    # ---- pointwise 1x1 conv == channel matmul on the MXU ----
    # WOP is a sublane multiple, so the offset-0 slice and the reshape that
    # merges (TH, WOP) onto the sublane axis are relayout free.
    # TODO(synk): split the band into row chunks with a double-buffered acc and
    # interleave depthwise(chunk i+1) with matmul(chunk i) to overlap VPU & MXU.
    pw = pw_ref[...].astype(mxu_dtype)                   # (Cin, Coutp)
    lhs = acc_ref[:, :WOP, :].astype(mxu_dtype).reshape(TH * WOP, cin)
    out = jnp.dot(lhs, pw, preferred_element_type=jnp.float32)
    o_ref[0] = out.reshape(TH, WOP, pw.shape[-1]).astype(o_ref.dtype)


def separable_conv2d(x_nchw, dw_weight, pw_weight, *, padding=1, stride=1,
                     dilation=1, mxu_dtype=jnp.bfloat16):
    """x_nchw: (N, Cin, H, W); dw_weight: (Cin, 1, K, K); pw_weight: (Cout, Cin, 1, 1)."""
    if stride != 1 or dilation != 1:
        raise NotImplementedError(
            "Pallas SeparableConv2d kernel implements stride=1, dilation=1 "
            "(the configuration DefEDNet uses).")

    N, Cin, H, W = x_nchw.shape
    K = dw_weight.shape[-1]
    assert dw_weight.shape == (Cin, 1, K, K), dw_weight.shape
    Cout = pw_weight.shape[0]
    assert pw_weight.shape == (Cout, Cin, 1, 1), pw_weight.shape

    Hp, Wp = H + 2 * padding, W + 2 * padding
    Ho, Wo = Hp - K + 1, Wp - K + 1
    assert Ho > 0 and Wo > 0, "kernel larger than padded input"

    # NOTE: channels sit on the 128-lane axis; for Cin << 128 (early layers) the
    # VPU/MXU lane utilization is only Cin/128.  TODO(synk): pack width groups
    # into the lane axis (last dim = G*Cin, G = 128//Cin) for the depthwise stage.

    # Lane-dense output only when the pad overhead is small; for Cout << 128 a
    # masked store of Cout lanes beats a 128/Cout-amplified HBM write.
    cout_ru = _round_up(Cout, _LANES)
    Coutp = cout_ru if 3 * cout_ru <= 4 * Cout else Cout

    # Pad output spatial dims to sublane multiples: relayout-free reshape/store
    # and no whole-image fallback band; the pad is sliced off in the wrapper.
    Ho_p = _round_up(Ho, _SUBLANES)
    Wo_p = _round_up(Wo, _SUBLANES)
    Wpk = _round_up(Wo_p + K - 1, _SUBLANES)             # padded input width (roll friendly)

    in_isz = jnp.dtype(x_nchw.dtype).itemsize
    out_isz = in_isz
    lane_ci = _round_up(Cin, _LANES)                     # lanes a Cin row really occupies
    lane_co = _round_up(Coutp, _LANES)

    # ---- VMEM accounting: lane/sublane padded, incl. in-kernel intermediates ----
    in_row = Wpk * lane_ci * in_isz                      # one input-band row in VMEM
    f32_row = Wpk * lane_ci * 4                          # f32 acc / cast / rolled rows
    out_row = Wo_p * lane_co * out_isz                   # one output-band row in VMEM
    mm_row = Wo_p * (lane_ci * 2 + lane_co * 4)          # bf16 lhs + f32 matmul result
    w_bytes = 2 * (K * _SUBLANES * lane_ci * 4
                   + _round_up(Cin, _SUBLANES) * lane_co * 4)

    def footprint(th, in_rows):
        return (2 * in_rows * in_row                     # double-buffered input block(s)
                + 2 * th * out_row                       # double-buffered output block
                + th * f32_row                           # f32 accumulator scratch
                + 3 * in_rows * f32_row                  # f32 cast + ~2 live rolled copies
                + th * mm_row                            # pointwise lhs + f32 result
                + w_bytes)

    try:
        vmem_cap = int(pltpu.get_tpu_info().vmem_capacity_bytes)
    except Exception:
        vmem_cap = 64 * 1024 * 1024                      # conservative default = v7x per-TC
    vmem_target = min(vmem_cap * 3 // 4, 64 * 1024 * 1024)   # ~48 MiB v7x, 64 MiB v5e/v6e
    budget = vmem_target * 2 // 3

    halo_guess = 0 if K == 1 else _round_up(K - 1, _SUBLANES)
    cands = [t for t in range(_SUBLANES, Ho_p + 1, _SUBLANES) if Ho_p % t == 0]
    fitting = [t for t in cands if footprint(t, t + halo_guess) <= budget]
    if fitting:
        multi = [t for t in fitting if Ho_p // t >= 2]   # >=2 bands => DMA/compute overlap
        TH = max(multi) if multi else max(fitting)
    else:
        TH = min(cands)
    n_bands = Ho_p // TH

    # Band structure: main block of TH rows + (multi-band, K>1) an HB-row halo
    # block starting exactly at row (j+1)*TH; HB must divide TH for the blocked
    # index map, and the input is padded so the last band's halo is in bounds.
    if n_bands == 1:
        has_halo, HB, main_rows = False, 0, TH + K - 1
        Hin = main_rows
    elif K == 1:
        has_halo, HB, main_rows = False, 0, TH
        Hin = Ho_p
    else:
        HB = (K - 1) if TH % (K - 1) == 0 else _round_up(K - 1, _SUBLANES)
        if HB <= TH and TH % HB == 0:
            has_halo, main_rows = True, TH
            Hin = Ho_p + HB
        else:                                            # degenerate (huge K): one band
            TH, n_bands = Ho_p, 1
            has_halo, HB, main_rows = False, 0, TH + K - 1
            Hin = main_rows
    in_rows_per_step = main_rows + (HB if has_halo else 0)

    # ---- layout glue (plain JAX): NCHW -> NHWC + zero pad to kernel geometry ----
    # TODO(synk): zero the VMEM band in-kernel and DMA only interior rows to drop
    # this padded HBM copy of the input (largest remaining HBM cost on v5e/v6e).
    x_nhwc = jnp.transpose(x_nchw, (0, 2, 3, 1))
    x_pad = jnp.pad(x_nhwc, ((0, 0),
                             (padding, Hin - H - padding),
                             (padding, Wpk - W - padding),
                             (0, 0)))
    dww = jnp.transpose(dw_weight[:, 0, :, :], (1, 2, 0))          # (K, K, Cin)
    pww = jnp.transpose(pw_weight[:, :, 0, 0], (1, 0))             # (Cin, Cout)
    if Coutp != Cout:
        pww = jnp.pad(pww, ((0, 0), (0, Coutp - Cout)))            # zero columns

    # ---- BlockSpecs: band + halo are two blocked views of the same array ----
    in_specs = [pl.BlockSpec((1, main_rows, Wpk, Cin), lambda n, j: (n, j, 0, 0))]
    inputs = [x_pad]
    if has_halo:
        halo_stride = TH // HB                           # halo starts at row (j+1)*TH
        in_specs.append(pl.BlockSpec(
            (1, HB, Wpk, Cin), lambda n, j: (n, (j + 1) * halo_stride, 0, 0)))
        inputs.append(x_pad)
    in_specs += [
        pl.BlockSpec((K, K, Cin), lambda n, j: (0, 0, 0)),
        pl.BlockSpec((Cin, Coutp), lambda n, j: (0, 0)),
        # NOTE: if profiling on v5e/v6e shows exposed input DMA, add
        # pipeline_mode=pl.Buffered(3) to the main input spec (skip on v7x).
    ]
    inputs += [dww, pww]
    out_spec = pl.BlockSpec((1, TH, Wo_p, Coutp), lambda n, j: (n, j, 0, 0))

    fp = footprint(TH, in_rows_per_step)
    vmem_limit = int(min(vmem_target, 2 * fp))
    vmem_limit = max(vmem_limit, fp + (4 << 20), 32 << 20)
    vmem_limit = int(min(vmem_limit, vmem_cap))

    kernel = functools.partial(_sepconv_kernel, K=K, TH=TH, WOP=Wo_p,
                               has_halo=has_halo, mxu_dtype=mxu_dtype)

    out_nhwc = pl.pallas_call(
        kernel,
        out_shape=jax.ShapeDtypeStruct((N, Ho_p, Wo_p, Coutp), x_nchw.dtype),
        grid_spec=pltpu.PrefetchScalarGridSpec(
            num_scalar_prefetch=0,
            grid=(N, n_bands),
            in_specs=in_specs,
            out_specs=out_spec,
            scratch_shapes=[pltpu.VMEM((TH, Wpk, Cin), jnp.float32)],
        ),
        compiler_params=pltpu.CompilerParams(
            dimension_semantics=("parallel", "parallel"),
            vmem_limit_bytes=vmem_limit),
    )(*inputs)

    # TODO(synk): consumers that accept NHWC can skip this transpose (a full
    # output-sized HBM round trip); kept so the public API matches PyTorch NCHW.
    return jnp.transpose(out_nhwc[:, :Ho, :Wo, :Cout], (0, 3, 1, 2))


def _reference(x_nchw, dw_weight, pw_weight, *, padding=1):
    """Pure-JAX f32 reference matching PyTorch Conv2d semantics."""
    Cin = x_nchw.shape[1]
    y = lax.conv_general_dilated(
        x_nchw, dw_weight, window_strides=(1, 1),
        padding=((padding, padding), (padding, padding)),
        dimension_numbers=("NCHW", "OIHW", "NCHW"),
        feature_group_count=Cin)
    y = lax.conv_general_dilated(
        y, pw_weight, window_strides=(1, 1), padding="VALID",
        dimension_numbers=("NCHW", "OIHW", "NCHW"))
    return y


if __name__ == "__main__":
    key = jax.random.PRNGKey(0)

    # --- config 1: typical DefEDNet usage (3x3 depthwise, padding 1) ---
    N, Cin, H, W, Cout, K, PAD = 2, 4, 16, 16, 8, 3, 1
    kx, kd, kp, k2 = jax.random.split(key, 4)
    x = jax.random.normal(kx, (N, Cin, H, W), dtype=jnp.float32)
    dw_w = 0.1 * jax.random.normal(kd, (Cin, 1, K, K), dtype=jnp.float32)    # conv1.weight
    pw_w = 0.1 * jax.random.normal(kp, (Cout, Cin, 1, 1), dtype=jnp.float32) # pointwise.weight

    out = jax.block_until_ready(separable_conv2d(x, dw_w, pw_w, padding=PAD))
    out_f32 = jax.block_until_ready(
        separable_conv2d(x, dw_w, pw_w, padding=PAD, mxu_dtype=jnp.float32))
    ref = jax.block_until_ready(_reference(x, dw_w, pw_w, padding=PAD))

    assert out.shape == (N, Cout, H, W), out.shape
    assert jnp.allclose(out_f32, ref, atol=1e-4, rtol=1e-4), \
        float(jnp.max(jnp.abs(out_f32 - ref)))
    # Tolerance reflects bf16 rounding of the MXU operands (accumulation is f32).
    assert jnp.allclose(out, ref, atol=1e-2, rtol=1e-2), \
        float(jnp.max(jnp.abs(out - ref)))

    # --- config 2: ragged spatial dims (exercises the Ho/Wo sublane padding) ---
    N2, Cin2, H2, W2, Cout2 = 1, 8, 10, 12, 16
    ka, kb, kc = jax.random.split(k2, 3)
    x2 = jax.random.normal(ka, (N2, Cin2, H2, W2), dtype=jnp.float32)
    dw2 = 0.1 * jax.random.normal(kb, (Cin2, 1, K, K), dtype=jnp.float32)
    pw2 = 0.1 * jax.random.normal(kc, (Cout2, Cin2, 1, 1), dtype=jnp.float32)
    out2 = jax.block_until_ready(
        separable_conv2d(x2, dw2, pw2, padding=PAD, mxu_dtype=jnp.float32))
    ref2 = jax.block_until_ready(_reference(x2, dw2, pw2, padding=PAD))
    assert out2.shape == (N2, Cout2, H2, W2), out2.shape
    assert jnp.allclose(out2, ref2, atol=1e-4, rtol=1e-4), \
        float(jnp.max(jnp.abs(out2 - ref2)))

    print("KERNEL_OK")
</pallas_src>

<mosaic_0001>
module attributes {stable_mosaic.version = 11 : i64} {
  func.func @_sepconv_kernel(%arg0: i32, %arg1: i32, %arg2: memref<1x8x24x4xf32, #tpu.memory_space<vmem>>, %arg3: memref<1x2x24x4xf32, #tpu.memory_space<vmem>>, %arg4: memref<3x3x4xf32, #tpu.memory_space<vmem>>, %arg5: memref<4x8xf32, #tpu.memory_space<vmem>>, %arg6: memref<1x8x16x8xf32, #tpu.memory_space<vmem>>, %arg7: memref<8x24x4xf32, #tpu.memory_space<vmem>>) attributes {dimension_semantics = [#tpu.dimension_semantics<parallel>, #tpu.dimension_semantics<parallel>], iteration_bounds = array<i64: 2, 2>, scalar_prefetch = 0 : i64, scratch_operands = 1 : i64, tpu.core_type = #tpu.core_type<tc>, window_params = [{transform_indices = @transform_0, window_bounds = array<i64: 1, 8, 24, 4>}, {transform_indices = @transform_1, window_bounds = array<i64: 1, 2, 24, 4>}, {pipeline_mode = #tpu.pipeline_mode<synchronous>, transform_indices = @transform_2, window_bounds = array<i64: 3, 3, 4>}, {pipeline_mode = #tpu.pipeline_mode<synchronous>, transform_indices = @transform_3, window_bounds = array<i64: 4, 8>}, {transform_indices = @transform_4, window_bounds = array<i64: 1, 8, 16, 8>}]} {
    %c0 = arith.constant 0 : index
    %c0_0 = arith.constant 0 : index
    %c0_1 = arith.constant 0 : index
    %0 = vector.load %arg4[%c0, %c0_0, %c0_1] : memref<3x3x4xf32, #tpu.memory_space<vmem>>, vector<3x3x4xf32>
    %c0_2 = arith.constant 0 : index
    %c0_3 = arith.constant 0 : index
    %c0_4 = arith.constant 0 : index
    %c0_5 = arith.constant 0 : index
    %1 = vector.load %arg2[%c0_2, %c0_3, %c0_4, %c0_5] : memref<1x8x24x4xf32, #tpu.memory_space<vmem>>, vector<1x8x24x4xf32>
    %2 = vector.shape_cast %1 : vector<1x8x24x4xf32> to vector<8x24x4xf32>
    %3 = vector.extract_strided_slice %0 {offsets = [0, 0, 0], sizes = [1, 1, 4], strides = [1, 1, 1]} : vector<3x3x4xf32> to vector<1x1x4xf32>
    %4 = vector.shape_cast %3 : vector<1x1x4xf32> to vector<4xf32>
    %5 = vector.shape_cast %4 : vector<4xf32> to vector<1x1x4xf32>
    %6 = vector.broadcast %5 : vector<1x1x4xf32> to vector<8x24x4xf32>
    %7 = arith.mulf %2, %6 : vector<8x24x4xf32>
    %c0_6 = arith.constant 0 : index
    %c0_7 = arith.constant 0 : index
    %c0_8 = arith.constant 0 : index
    %8 = vector.load %arg7[%c0_6, %c0_7, %c0_8] : memref<8x24x4xf32, #tpu.memory_space<vmem>>, vector<8x24x4xf32>
    tpu.vector_store %arg7[%c0_6, %c0_7, %c0_8], %7 {strides = array<i32>} : memref<8x24x4xf32, #tpu.memory_space<vmem>>, vector<8x24x4xf32>,
    %9 = vector.extract_strided_slice %0 {offsets = [1, 0, 0], sizes = [1, 1, 4], strides = [1, 1, 1]} : vector<3x3x4xf32> to vector<1x1x4xf32>
    %10 = vector.shape_cast %9 : vector<1x1x4xf32> to vector<4xf32>
    %11 = vector.shape_cast %10 : vector<4xf32> to vector<1x1x4xf32>
    %c0_9 = arith.constant 0 : index
    %c0_10 = arith.constant 0 : index
    %c0_11 = arith.constant 0 : index
    %12 = vector.load %arg7[%c0_9, %c0_10, %c0_11] : memref<8x24x4xf32, #tpu.memory_space<vmem>>, vector<7x24x4xf32>
    %13 = vector.extract_strided_slice %2 {offsets = [1, 0, 0], sizes = [7, 24, 4], strides = [1, 1, 1]} : vector<8x24x4xf32> to vector<7x24x4xf32>
    %14 = vector.broadcast %11 : vector<1x1x4xf32> to vector<7x24x4xf32>
    %15 = arith.mulf %13, %14 : vector<7x24x4xf32>
    %16 = arith.addf %12, %15 : vector<7x24x4xf32>
    %c0_12 = arith.constant 0 : index
    %c0_13 = arith.constant 0 : index
    %c0_14 = arith.constant 0 : index
    %17 = vector.load %arg7[%c0_12, %c0_13, %c0_14] : memref<8x24x4xf32, #tpu.memory_space<vmem>>, vector<7x24x4xf32>
    tpu.vector_store %arg7[%c0_12, %c0_13, %c0_14], %16 {strides = array<i32>} : memref<8x24x4xf32, #tpu.memory_space<vmem>>, vector<7x24x4xf32>,
    %18 = vector.extract_strided_slice %0 {offsets = [2, 0, 0], sizes = [1, 1, 4], strides = [1, 1, 1]} : vector<3x3x4xf32> to vector<1x1x4xf32>
    %19 = vector.shape_cast %18 : vector<1x1x4xf32> to vector<4xf32>
    %20 = vector.shape_cast %19 : vector<4xf32> to vector<1x1x4xf32>
    %c0_15 = arith.constant 0 : index
    %c0_16 = arith.constant 0 : index
    %c0_17 = arith.constant 0 : index
    %21 = vector.load %arg7[%c0_15, %c0_16, %c0_17] : memref<8x24x4xf32, #tpu.memory_space<vmem>>, vector<6x24x4xf32>
    %22 = vector.extract_strided_slice %2 {offsets = [2, 0, 0], sizes = [6, 24, 4], strides = [1, 1, 1]} : vector<8x24x4xf32> to vector<6x24x4xf32>
    %23 = vector.broadcast %20 : vector<1x1x4xf32> to vector<6x24x4xf32>
    %24 = arith.mulf %22, %23 : vector<6x24x4xf32>
    %25 = arith.addf %21, %24 : vector<6x24x4xf32>
    %c0_18 = arith.constant 0 : index
    %c0_19 = arith.constant 0 : index
    %c0_20 = arith.constant 0 : index
    %26 = vector.load %arg7[%c0_18, %c0_19, %c0_20] : memref<8x24x4xf32, #tpu.memory_space<vmem>>, vector<6x24x4xf32>
    tpu.vector_store %arg7[%c0_18, %c0_19, %c0_20], %25 {strides = array<i32>} : memref<8x24x4xf32, #tpu.memory_space<vmem>>, vector<6x24x4xf32>,
    %c23_i32 = arith.constant 23 : i32
    %27 = tpu.dynamic_rotate %2 by %c23_i32 dim 1 : vector<8x24x4xf32>, i32 -> vector<8x24x4xf32>
    %28 = vector.extract_strided_slice %0 {offsets = [0, 1, 0], sizes = [1, 1, 4], strides = [1, 1, 1]} : vector<3x3x4xf32> to vector<1x1x4xf32>
    %29 = vector.shape_cast %28 : vector<1x1x4xf32> to vector<4xf32>
    %30 = vector.shape_cast %29 : vector<4xf32> to vector<1x1x4xf32>
    %c0_21 = arith.constant 0 : index
    %c0_22 = arith.constant 0 : index
    %c0_23 = arith.constant 0 : index
    %31 = vector.load %arg7[%c0_21, %c0_22, %c0_23] : memref<8x24x4xf32, #tpu.memory_space<vmem>>, vector<8x24x4xf32>
    %32 = vector.broadcast %30 : vector<1x1x4xf32> to vector<8x24x4xf32>
    %33 = arith.mulf %27, %32 : vector<8x24x4xf32>
    %34 = arith.addf %31, %33 : vector<8x24x4xf32>
    %c0_24 = arith.constant 0 : index
    %c0_25 = arith.constant 0 : index
    %c0_26 = arith.constant 0 : index
    %35 = vector.load %arg7[%c0_24, %c0_25, %c0_26] : memref<8x24x4xf32, #tpu.memory_space<vmem>>, vector<8x24x4xf32>
    tpu.vector_store %arg7[%c0_24, %c0_25, %c0_26], %34 {strides = array<i32>} : memref<8x24x4xf32, #tpu.memory_space<vmem>>, vector<8x24x4xf32>,
    %36 = vector.extract_strided_slice %0 {offsets = [1, 1, 0], sizes = [1, 1, 4], strides = [1, 1, 1]} : vector<3x3x4xf32> to vector<1x1x4xf32>
    %37 = vector.shape_cast %36 : vector<1x1x4xf32> to vector<4xf32>
    %38 = vector.shape_cast %37 : vector<4xf32> to vector<1x1x4xf32>
    %c0_27 = arith.constant 0 : index
    %c0_28 = arith.constant 0 : index
    %c0_29 = arith.constant 0 : index
    %39 = vector.load %arg7[%c0_27, %c0_28, %c0_29] : memref<8x24x4xf32, #tpu.memory_space<vmem>>, vector<7x24x4xf32>
    %40 = vector.extract_strided_slice %27 {offsets = [1, 0, 0], sizes = [7, 24, 4], strides = [1, 1, 1]} : vector<8x24x4xf32> to vector<7x24x4xf32>
    %41 = vector.broadcast %38 : vector<1x1x4xf32> to vector<7x24x4xf32>
    %42 = arith.mulf %40, %41 : vector<7x24x4xf32>
    %43 = arith.addf %39, %42 : vector<7x24x4xf32>
    %c0_30 = arith.constant 0 : index
    %c0_31 = arith.constant 0 : index
    %c0_32 = arith.constant 0 : index
    %44 = vector.load %arg7[%c0_30, %c0_31, %c0_32] : memref<8x24x4xf32, #tpu.memory_space<vmem>>, vector<7x24x4xf32>
    tpu.vector_store %arg7[%c0_30, %c0_31, %c0_32], %43 {strides = array<i32>} : memref<8x24x4xf32, #tpu.memory_space<vmem>>, vector<7x24x4xf32>,
    %45 = vector.extract_strided_slice %0 {offsets = [2, 1, 0], sizes = [1, 1, 4], strides = [1, 1, 1]} : vector<3x3x4xf32> to vector<1x1x4xf32>
    %46 = vector.shape_cast %45 : vector<1x1x4xf32> to vector<4xf32>
    %47 = vector.shape_cast %46 : vector<4xf32> to vector<1x1x4xf32>
    %c0_33 = arith.constant 0 : index
    %c0_34 = arith.constant 0 : index
    %c0_35 = arith.constant 0 : index
    %48 = vector.load %arg7[%c0_33, %c0_34, %c0_35] : memref<8x24x4xf32, #tpu.memory_space<vmem>>, vector<6x24x4xf32>
    %49 = vector.extract_strided_slice %27 {offsets = [2, 0, 0], sizes = [6, 24, 4], strides = [1, 1, 1]} : vector<8x24x4xf32> to vector<6x24x4xf32>
    %50 = vector.broadcast %47 : vector<1x1x4xf32> to vector<6x24x4xf32>
    %51 = arith.mulf %49, %50 : vector<6x24x4xf32>
    %52 = arith.addf %48, %51 : vector<6x24x4xf32>
    %c0_36 = arith.constant 0 : index
    %c0_37 = arith.constant 0 : index
    %c0_38 = arith.constant 0 : index
    %53 = vector.load %arg7[%c0_36, %c0_37, %c0_38] : memref<8x24x4xf32, #tpu.memory_space<vmem>>, vector<6x24x4xf32>
    tpu.vector_store %arg7[%c0_36, %c0_37, %c0_38], %52 {strides = array<i32>} : memref<8x24x4xf32, #tpu.memory_space<vmem>>, vector<6x24x4xf32>,
    %c22_i32 = arith.constant 22 : i32
    %54 = tpu.dynamic_rotate %2 by %c22_i32 dim 1 : vector<8x24x4xf32>, i32 -> vector<8x24x4xf32>
    %55 = vector.extract_strided_slice %0 {offsets = [0, 2, 0], sizes = [1, 1, 4], strides = [1, 1, 1]} : vector<3x3x4xf32> to vector<1x1x4xf32>
    %56 = vector.shape_cast %55 : vector<1x1x4xf32> to vector<4xf32>
    %57 = vector.shape_cast %56 : vector<4xf32> to vector<1x1x4xf32>
    %c0_39 = arith.constant 0 : index
    %c0_40 = arith.constant 0 : index
    %c0_41 = arith.constant 0 : index
    %58 = vector.load %arg7[%c0_39, %c0_40, %c0_41] : memref<8x24x4xf32, #tpu.memory_space<vmem>>, vector<8x24x4xf32>
    %59 = vector.broadcast %57 : vector<1x1x4xf32> to vector<8x24x4xf32>
    %60 = arith.mulf %54, %59 : vector<8x24x4xf32>
    %61 = arith.addf %58, %60 : vector<8x24x4xf32>
    %c0_42 = arith.constant 0 : index
    %c0_43 = arith.constant 0 : index
    %c0_44 = arith.constant 0 : index
    %62 = vector.load %arg7[%c0_42, %c0_43, %c0_44] : memref<8x24x4xf32, #tpu.memory_space<vmem>>, vector<8x24x4xf32>
    tpu.vector_store %arg7[%c0_42, %c0_43, %c0_44], %61 {strides = array<i32>} : memref<8x24x4xf32, #tpu.memory_space<vmem>>, vector<8x24x4xf32>,
    %63 = vector.extract_strided_slice %0 {offsets = [1, 2, 0], sizes = [1, 1, 4], strides = [1, 1, 1]} : vector<3x3x4xf32> to vector<1x1x4xf32>
    %64 = vector.shape_cast %63 : vector<1x1x4xf32> to vector<4xf32>
    %65 = vector.shape_cast %64 : vector<4xf32> to vector<1x1x4xf32>
    %c0_45 = arith.constant 0 : index
    %c0_46 = arith.constant 0 : index
    %c0_47 = arith.constant 0 : index
    %66 = vector.load %arg7[%c0_45, %c0_46, %c0_47] : memref<8x24x4xf32, #tpu.memory_space<vmem>>, vector<7x24x4xf32>
    %67 = vector.extract_strided_slice %54 {offsets = [1, 0, 0], sizes = [7, 24, 4], strides = [1, 1, 1]} : vector<8x24x4xf32> to vector<7x24x4xf32>
    %68 = vector.broadcast %65 : vector<1x1x4xf32> to vector<7x24x4xf32>
    %69 = arith.mulf %67, %68 : vector<7x24x4xf32>
    %70 = arith.addf %66, %69 : vector<7x24x4xf32>
    %c0_48 = arith.constant 0 : index
    %c0_49 = arith.constant 0 : index
    %c0_50 = arith.constant 0 : index
    %71 = vector.load %arg7[%c0_48, %c0_49, %c0_50] : memref<8x24x4xf32, #tpu.memory_space<vmem>>, vector<7x24x4xf32>
    tpu.vector_store %arg7[%c0_48, %c0_49, %c0_50], %70 {strides = array<i32>} : memref<8x24x4xf32, #tpu.memory_space<vmem>>, vector<7x24x4xf32>,
    %72 = vector.extract_strided_slice %0 {offsets = [2, 2, 0], sizes = [1, 1, 4], strides = [1, 1, 1]} : vector<3x3x4xf32> to vector<1x1x4xf32>
    %73 = vector.shape_cast %72 : vector<1x1x4xf32> to vector<4xf32>
    %74 = vector.shape_cast %73 : vector<4xf32> to vector<1x1x4xf32>
    %c0_51 = arith.constant 0 : index
    %c0_52 = arith.constant 0 : index
    %c0_53 = arith.constant 0 : index
    %75 = vector.load %arg7[%c0_51, %c0_52, %c0_53] : memref<8x24x4xf32, #tpu.memory_space<vmem>>, vector<6x24x4xf32>
    %76 = vector.extract_strided_slice %54 {offsets = [2, 0, 0], sizes = [6, 24, 4], strides = [1, 1, 1]} : vector<8x24x4xf32> to vector<6x24x4xf32>
    %77 = vector.broadcast %74 : vector<1x1x4xf32> to vector<6x24x4xf32>
    %78 = arith.mulf %76, %77 : vector<6x24x4xf32>
    %79 = arith.addf %75, %78 : vector<6x24x4xf32>
    %c0_54 = arith.constant 0 : index
    %c0_55 = arith.constant 0 : index
    %c0_56 = arith.constant 0 : index
    %80 = vector.load %arg7[%c0_54, %c0_55, %c0_56] : memref<8x24x4xf32, #tpu.memory_space<vmem>>, vector<6x24x4xf32>
    tpu.vector_store %arg7[%c0_54, %c0_55, %c0_56], %79 {strides = array<i32>} : memref<8x24x4xf32, #tpu.memory_space<vmem>>, vector<6x24x4xf32>,
    %c0_57 = arith.constant 0 : index
    %c0_58 = arith.constant 0 : index
    %c0_59 = arith.constant 0 : index
    %c0_60 = arith.constant 0 : index
    %81 = vector.load %arg3[%c0_57, %c0_58, %c0_59, %c0_60] : memref<1x2x24x4xf32, #tpu.memory_space<vmem>>, vector<1x2x24x4xf32>
    %82 = vector.shape_cast %81 : vector<1x2x24x4xf32> to vector<2x24x4xf32>
    %83 = vector.extract_strided_slice %0 {offsets = [1, 0, 0], sizes = [1, 1, 4], strides = [1, 1, 1]} : vector<3x3x4xf32> to vector<1x1x4xf32>
    %84 = vector.shape_cast %83 : vector<1x1x4xf32> to vector<4xf32>
    %85 = vector.shape_cast %84 : vector<4xf32> to vector<1x1x4xf32>
    %c7 = arith.constant 7 : index
    %c0_61 = arith.constant 0 : index
    %c0_62 = arith.constant 0 : index
    %86 = vector.load %arg7[%c7, %c0_61, %c0_62] : memref<8x24x4xf32, #tpu.memory_space<vmem>>, vector<1x24x4xf32>
    %87 = vector.extract_strided_slice %82 {offsets = [0, 0, 0], sizes = [1, 24, 4], strides = [1, 1, 1]} : vector<2x24x4xf32> to vector<1x24x4xf32>
    %88 = vector.broadcast %85 : vector<1x1x4xf32> to vector<1x24x4xf32>
    %89 = arith.mulf %87, %88 : vector<1x24x4xf32>
    %90 = arith.addf %86, %89 : vector<1x24x4xf32>
    %c7_63 = arith.constant 7 : index
    %c0_64 = arith.constant 0 : index
    %c0_65 = arith.constant 0 : index
    %91 = vector.load %arg7[%c7_63, %c0_64, %c0_65] : memref<8x24x4xf32, #tpu.memory_space<vmem>>, vector<1x24x4xf32>
    tpu.vector_store %arg7[%c7_63, %c0_64, %c0_65], %90 {strides = array<i32>} : memref<8x24x4xf32, #tpu.memory_space<vmem>>, vector<1x24x4xf32>,
    %92 = vector.extract_strided_slice %0 {offsets = [2, 0, 0], sizes = [1, 1, 4], strides = [1, 1, 1]} : vector<3x3x4xf32> to vector<1x1x4xf32>
    %93 = vector.shape_cast %92 : vector<1x1x4xf32> to vector<4xf32>
    %94 = vector.shape_cast %93 : vector<4xf32> to vector<1x1x4xf32>
    %c6 = arith.constant 6 : index
    %c0_66 = arith.constant 0 : index
    %c0_67 = arith.constant 0 : index
    %95 = vector.load %arg7[%c6, %c0_66, %c0_67] : memref<8x24x4xf32, #tpu.memory_space<vmem>>, vector<2x24x4xf32>
    %96 = vector.broadcast %94 : vector<1x1x4xf32> to vector<2x24x4xf32>
    %97 = arith.mulf %82, %96 : vector<2x24x4xf32>
    %98 = arith.addf %95, %97 : vector<2x24x4xf32>
    %c6_68 = arith.constant 6 : index
    %c0_69 = arith.constant 0 : index
    %c0_70 = arith.constant 0 : index
    %99 = vector.load %arg7[%c6_68, %c0_69, %c0_70] : memref<8x24x4xf32, #tpu.memory_space<vmem>>, vector<2x24x4xf32>
    tpu.vector_store %arg7[%c6_68, %c0_69, %c0_70], %98 {strides = array<i32>} : memref<8x24x4xf32, #tpu.memory_space<vmem>>, vector<2x24x4xf32>,
    %c23_i32_71 = arith.constant 23 : i32
    %100 = tpu.dynamic_rotate %82 by %c23_i32_71 dim 1 : vector<2x24x4xf32>, i32 -> vector<2x24x4xf32>
    %101 = vector.extract_strided_slice %0 {offsets = [1, 1, 0], sizes = [1, 1, 4], strides = [1, 1, 1]} : vector<3x3x4xf32> to vector<1x1x4xf32>
    %102 = vector.shape_cast %101 : vector<1x1x4xf32> to vector<4xf32>
    %103 = vector.shape_cast %102 : vector<4xf32> to vector<1x1x4xf32>
    %c7_72 = arith.constant 7 : index
    %c0_73 = arith.constant 0 : index
    %c0_74 = arith.constant 0 : index
    %104 = vector.load %arg7[%c7_72, %c0_73, %c0_74] : memref<8x24x4xf32, #tpu.memory_space<vmem>>, vector<1x24x4xf32>
    %105 = vector.extract_strided_slice %100 {offsets = [0, 0, 0], sizes = [1, 24, 4], strides = [1, 1, 1]} : vector<2x24x4xf32> to vector<1x24x4xf32>
    %106 = vector.broadcast %103 : vector<1x1x4xf32> to vector<1x24x4xf32>
    %107 = arith.mulf %105, %106 : vector<1x24x4xf32>
    %108 = arith.addf %104, %107 : vector<1x24x4xf32>
    %c7_75 = arith.constant 7 : index
    %c0_76 = arith.constant 0 : index
    %c0_77 = arith.constant 0 : index
    %109 = vector.load %arg7[%c7_75, %c0_76, %c0_77] : memref<8x24x4xf32, #tpu.memory_space<vmem>>, vector<1x24x4xf32>
    tpu.vector_store %arg7[%c7_75, %c0_76, %c0_77], %108 {strides = array<i32>} : memref<8x24x4xf32, #tpu.memory_space<vmem>>, vector<1x24x4xf32>,
    %110 = vector.extract_strided_slice %0 {offsets = [2, 1, 0], sizes = [1, 1, 4], strides = [1, 1, 1]} : vector<3x3x4xf32> to vector<1x1x4xf32>
    %111 = vector.shape_cast %110 : vector<1x1x4xf32> to vector<4xf32>
    %112 = vector.shape_cast %111 : vector<4xf32> to vector<1x1x4xf32>
    %c6_78 = arith.constant 6 : index
    %c0_79 = arith.constant 0 : index
    %c0_80 = arith.constant 0 : index
    %113 = vector.load %arg7[%c6_78, %c0_79, %c0_80] : memref<8x24x4xf32, #tpu.memory_space<vmem>>, vector<2x24x4xf32>
    %114 = vector.broadcast %112 : vector<1x1x4xf32> to vector<2x24x4xf32>
    %115 = arith.mulf %100, %114 : vector<2x24x4xf32>
    %116 = arith.addf %113, %115 : vector<2x24x4xf32>
    %c6_81 = arith.constant 6 : index
    %c0_82 = arith.constant 0 : index
    %c0_83 = arith.constant 0 : index
    %117 = vector.load %arg7[%c6_81, %c0_82, %c0_83] : memref<8x24x4xf32, #tpu.memory_space<vmem>>, vector<2x24x4xf32>
    tpu.vector_store %arg7[%c6_81, %c0_82, %c0_83], %116 {strides = array<i32>} : memref<8x24x4xf32, #tpu.memory_space<vmem>>, vector<2x24x4xf32>,
    %c22_i32_84 = arith.constant 22 : i32
    %118 = tpu.dynamic_rotate %82 by %c22_i32_84 dim 1 : vector<2x24x4xf32>, i32 -> vector<2x24x4xf32>
    %119 = vector.extract_strided_slice %0 {offsets = [1, 2, 0], sizes = [1, 1, 4], strides = [1, 1, 1]} : vector<3x3x4xf32> to vector<1x1x4xf32>
    %120 = vector.shape_cast %119 : vector<1x1x4xf32> to vector<4xf32>
    %121 = vector.shape_cast %120 : vector<4xf32> to vector<1x1x4xf32>
    %c7_85 = arith.constant 7 : index
    %c0_86 = arith.constant 0 : index
    %c0_87 = arith.constant 0 : index
    %122 = vector.load %arg7[%c7_85, %c0_86, %c0_87] : memref<8x24x4xf32, #tpu.memory_space<vmem>>, vector<1x24x4xf32>
    %123 = vector.extract_strided_slice %118 {offsets = [0, 0, 0], sizes = [1, 24, 4], strides = [1, 1, 1]} : vector<2x24x4xf32> to vector<1x24x4xf32>
    %124 = vector.broadcast %121 : vector<1x1x4xf32> to vector<1x24x4xf32>
    %125 = arith.mulf %123, %124 : vector<1x24x4xf32>
    %126 = arith.addf %122, %125 : vector<1x24x4xf32>
    %c7_88 = arith.constant 7 : index
    %c0_89 = arith.constant 0 : index
    %c0_90 = arith.constant 0 : index
    %127 = vector.load %arg7[%c7_88, %c0_89, %c0_90] : memref<8x24x4xf32, #tpu.memory_space<vmem>>, vector<1x24x4xf32>
    tpu.vector_store %arg7[%c7_88, %c0_89, %c0_90], %126 {strides = array<i32>} : memref<8x24x4xf32, #tpu.memory_space<vmem>>, vector<1x24x4xf32>,
    %128 = vector.extract_strided_slice %0 {offsets = [2, 2, 0], sizes = [1, 1, 4], strides = [1, 1, 1]} : vector<3x3x4xf32> to vector<1x1x4xf32>
    %129 = vector.shape_cast %128 : vector<1x1x4xf32> to vector<4xf32>
    %130 = vector.shape_cast %129 : vector<4xf32> to vector<1x1x4xf32>
    %c6_91 = arith.constant 6 : index
    %c0_92 = arith.constant 0 : index
    %c0_93 = arith.constant 0 : index
    %131 = vector.load %arg7[%c6_91, %c0_92, %c0_93] : memref<8x24x4xf32, #tpu.memory_space<vmem>>, vector<2x24x4xf32>
    %132 = vector.broadcast %130 : vector<1x1x4xf32> to vector<2x24x4xf32>
    %133 = arith.mulf %118, %132 : vector<2x24x4xf32>
    %134 = arith.addf %131, %133 : vector<2x24x4xf32>
    %c6_94 = arith.constant 6 : index
    %c0_95 = arith.constant 0 : index
    %c0_96 = arith.constant 0 : index
    %135 = vector.load %arg7[%c6_94, %c0_95, %c0_96] : memref<8x24x4xf32, #tpu.memory_space<vmem>>, vector<2x24x4xf32>
    tpu.vector_store %arg7[%c6_94, %c0_95, %c0_96], %134 {strides = array<i32>} : memref<8x24x4xf32, #tpu.memory_space<vmem>>, vector<2x24x4xf32>,
    %c0_97 = arith.constant 0 : index
    %c0_98 = arith.constant 0 : index
    %136 = vector.load %arg5[%c0_97, %c0_98] : memref<4x8xf32, #tpu.memory_space<vmem>>, vector<4x8xf32>
    %137 = arith.truncf %136 : vector<4x8xf32> to vector<4x8xbf16>
    %c0_99 = arith.constant 0 : index
    %c0_100 = arith.constant 0 : index
    %c0_101 = arith.constant 0 : index
    %138 = vector.load %arg7[%c0_99, %c0_100, %c0_101] : memref<8x24x4xf32, #tpu.memory_space<vmem>>, vector<8x16x4xf32>
    %139 = arith.truncf %138 : vector<8x16x4xf32> to vector<8x16x4xbf16>
    %140 = vector.shape_cast %139 : vector<8x16x4xbf16> to vector<128x4xbf16>
    %cst = arith.constant dense<0.000000e+00> : vector<128x8xf32>
    %141 = tpu.matmul %140, %137, %cst {dimension_numbers = #tpu.dot_dimension_numbers<[1], [0], [0], [1], [0, 0, 1, 1], [], []>} : vector<128x4xbf16>, vector<4x8xbf16>, vector<128x8xf32> -> vector<128x8xf32>
    %142 = vector.shape_cast %141 : vector<128x8xf32> to vector<8x16x8xf32>
    %c0_102 = arith.constant 0 : index
    %c0_103 = arith.constant 0 : index
    %c0_104 = arith.constant 0 : index
    %c0_105 = arith.constant 0 : index
    %143 = vector.load %arg6[%c0_102, %c0_103, %c0_104, %c0_105] : memref<1x8x16x8xf32, #tpu.memory_space<vmem>>, vector<1x8x16x8xf32>
    %144 = vector.shape_cast %143 : vector<1x8x16x8xf32> to vector<8x16x8xf32>
    %145 = vector.shape_cast %142 : vector<8x16x8xf32> to vector<1x8x16x8xf32>
    tpu.vector_store %arg6[%c0_102, %c0_103, %c0_104, %c0_105], %145 {strides = array<i32>} : memref<1x8x16x8xf32, #tpu.memory_space<vmem>>, vector<1x8x16x8xf32>,
    return
  }
  func.func @transform_0(%arg0: i32, %arg1: i32) -> (i32, i32, i32, i32) {
    %c0_i32 = arith.constant 0 : i32
    %c0_i32_0 = arith.constant 0 : i32
    %c0_i32_1 = arith.constant 0 : i32
    return %arg0, %arg1, %c0_i32, %c0_i32_0 : i32, i32, i32, i32
  }
  func.func @transform_1(%arg0: i32, %arg1: i32) -> (i32, i32, i32, i32) {
    %c1_i32 = arith.constant 1 : i32
    %0 = arith.addi %arg1, %c1_i32 : i32
    %c4_i32 = arith.constant 4 : i32
    %1 = arith.muli %0, %c4_i32 : i32
    %c0_i32 = arith.constant 0 : i32
    %c0_i32_0 = arith.constant 0 : i32
    %c0_i32_1 = arith.constant 0 : i32
    return %arg0, %1, %c0_i32, %c0_i32_0 : i32, i32, i32, i32
  }
  func.func @transform_2(%arg0: i32, %arg1: i32) -> (i32, i32, i32) {
    %c0_i32 = arith.constant 0 : i32
    %c0_i32_0 = arith.constant 0 : i32
    %c0_i32_1 = arith.constant 0 : i32
    %c0_i32_2 = arith.constant 0 : i32
    return %c0_i32, %c0_i32_0, %c0_i32_1 : i32, i32, i32
  }
  func.func @transform_3(%arg0: i32, %arg1: i32) -> (i32, i32) {
    %c0_i32 = arith.constant 0 : i32
    %c0_i32_0 = arith.constant 0 : i32
    %c0_i32_1 = arith.constant 0 : i32
    return %c0_i32, %c0_i32_0 : i32, i32
  }
  func.func @transform_4(%arg0: i32, %arg1: i32) -> (i32, i32, i32, i32) {
    %c0_i32 = arith.constant 0 : i32
    %c0_i32_0 = arith.constant 0 : i32
    %c0_i32_1 = arith.constant 0 : i32
    return %arg0, %arg1, %c0_i32, %c0_i32_0 : i32, i32, i32, i32
  }
}

</mosaic_0001>

<llo_original>
// kernel: tpu_custom_call.1
$region0: #{tpu_custom_call.1}
  #allocation0 [shape = 'u32[]', space=smem, size = 0x4, offset = 0x4, fixed_abs, tag = 'smem constant byte address 0x4 - core index']
  #allocation1 [shape = 'u32[144,128]{1,0:T(1,128)}', space=vmem, size = 0x12000, scoped, tag = 'internal scratch']
  #allocation2 [shape = 'f32[8,24,4]{2,1,0:T(8,128)}', space=vmem, size = 0x18000, scoped, tag = 'scratch operand']
  %s0 = inlined_call_operand.vmem [shape: f32[2,18,24,4], index: 0, kind: input, shape index: {}]
  %s1 = inlined_call_operand.vmem [shape: f32[2,18,24,4], index: 1, kind: input, shape index: {}]
  %s2 = inlined_call_operand.vmem [shape: f32[3,3,4], index: 2, kind: input, shape index: {}]
  %s3 = inlined_call_operand.vmem [shape: f32[4,8], index: 3, kind: input, shape index: {}]
  %s4 = inlined_call_operand.vmem [shape: f32[2,16,16,8], index: 4, kind: output, shape index: {}]
  %s5 = sld [smem:[#allocation0]]
  $region49: #{tpu_custom_call.1} parent=0
    _
  %s7 = ssub.s32 1, %s5
  %s8 = scalar_select 0, %s7, %s5
  loop: start=0, step=1, limit=6
  $region2: #{tpu_custom_call.1} parent=0 // loop_pre_header
    _
  $region3: #{tpu_custom_call.1} parent=0 // loop_header
    %s10 = sphi 0, %s14
    %p11 = scmp.ge.s32.totalorder %s10, 6
    %s17 = sphi 0, %s29
    %s18 = sphi 0, %s25
    %s19 = sphi 0, %s17
    %s20 = sphi 0, %s18
    %s21 = sphi 0, %s19
    %s22 = sphi 0, %s20
    %s34 = sphi 0, %s36
    %s37 = sphi 0, %s34
    %s38 = sphi 0, %s37
    %s54 = sphi 0, %s38
    %s66 = sphi 0, %s68
    %s69 = sphi 0, %s66
    %s70 = sphi 0, %s69
    %s86 = sphi 0, %s70
    %s90 = sphi 0, %s90
    %s92 = sphi 0, %s90
    %s93 = sphi 0, %s92
    %s107 = sphi 0, %s93
    %s111 = sphi 0, %s111
    %s113 = sphi 0, %s111
    %s114 = sphi 0, %s113
    %s128 = sphi 0, %s114
    %s136 = sphi 0, %s138
    %s139 = sphi 0, %s136
    %s140 = sphi 0, %s139
    %s156 = sphi 0, %s140
  $region4: #{tpu_custom_call.1} parent=0 // loop_header_branch
    %13 = sbr.rel (%p11) target = $region8
  $region5: #{tpu_custom_call.1} parent=0 // loop_body
    %s15 = ssub.s32 %s10, 1
    %s16 = ssub.s32 %s10, 2
    %s23 = sadd.s32 1, %s18
    %p24 = scmp.ge.s32.totalorder %s23, 2
    %s25 = scalar_select %p24, 0, %s23
    %s26 = sadd.s32 1, %s17
    %s27 = scalar_select %p24, %s26, %s17
    %p28 = scmp.ge.s32.totalorder %s27, 2
    %s29 = scalar_select %p28, 0, %s27
    %s30 = ssub.s32 %s17, %s29
    %s31 = ssub.s32 %s18, %s25
    %s32 = sor.u32 %s30, %s31
    %p33 = scmp.eq.s32.totalorder %s32, 0
    %s35 = sadd.s32 %s34, 1
    %s36 = scalar_select %p33, %s34, %s35
    %p39 = pneg %p33
    %p40 = scmp.eq.s32.totalorder %s10, 3
    %p41 = por %p39, %p40
    %p42 = scmp.ne.s32.totalorder %s34, %s37
    %p43 = scmp.eq.s32.totalorder %s10, 0
    %p44 = por %p42, %p43
    %p45 = scmp.ne.s32.totalorder %s34, %s37
    %p46 = scmp.eq.s32.totalorder %s15, 3
    %p47 = por %p45, %p46
    %p48 = scmp.ne.s32.totalorder %s37, %s38
    %p49 = scmp.eq.s32.totalorder %s15, 0
    %p50 = por %p48, %p49
    %p51 = scmp.ne.s32.totalorder %s37, %s38
    %p52 = scmp.eq.s32.totalorder %s16, 3
    %p53 = por %p51, %p52
    %p55 = scmp.ne.s32.totalorder %s38, %s54
    %p56 = scmp.eq.s32.totalorder %s16, 0
    %p57 = por %p55, %p56
    %s58 = sadd.s32 %s18, 1
    %s59 = smul.u32 %s58, 4
    %s60 = sadd.s32 %s25, 1
    %s61 = smul.u32 %s60, 4
    %s62 = ssub.s32 %s17, %s29
    %s63 = ssub.s32 %s59, %s61
    %s64 = sor.u32 %s62, %s63
    %p65 = scmp.eq.s32.totalorder %s64, 0
    %s67 = sadd.s32 %s66, 1
    %s68 = scalar_select %p65, %s66, %s67
    %p71 = pneg %p65
    %p72 = scmp.eq.s32.totalorder %s10, 3
    %p73 = por %p71, %p72
    %p74 = scmp.ne.s32.totalorder %s66, %s69
    %p75 = scmp.eq.s32.totalorder %s10, 0
    %p76 = por %p74, %p75
    %p77 = scmp.ne.s32.totalorder %s66, %s69
    %p78 = scmp.eq.s32.totalorder %s15, 3
    %p79 = por %p77, %p78
    %p80 = scmp.ne.s32.totalorder %s69, %s70
    %p81 = scmp.eq.s32.totalorder %s15, 0
    %p82 = por %p80, %p81
    %p83 = scmp.ne.s32.totalorder %s69, %s70
    %p84 = scmp.eq.s32.totalorder %s16, 3
    %p85 = por %p83, %p84
    %p87 = scmp.ne.s32.totalorder %s70, %s86
    %p88 = scmp.eq.s32.totalorder %s16, 0
    %p89 = por %p87, %p88
    %s91 = sadd.s32 %s90, 1
    %p94 = scmp.eq.s32.totalorder %s10, 3
    %p95 = scmp.ne.s32.totalorder %s90, %s92
    %p96 = scmp.eq.s32.totalorder %s10, 0
    %p97 = por %p95, %p96
    %p98 = scmp.ne.s32.totalorder %s90, %s92
    %p99 = scmp.eq.s32.totalorder %s15, 3
    %p100 = por %p98, %p99
    %p101 = scmp.ne.s32.totalorder %s92, %s93
    %p102 = scmp.eq.s32.totalorder %s15, 0
    %p103 = por %p101, %p102
    %p104 = scmp.ne.s32.totalorder %s92, %s93
    %p105 = scmp.eq.s32.totalorder %s16, 3
    %p106 = por %p104, %p105
    %p108 = scmp.ne.s32.totalorder %s93, %s107
    %p109 = scmp.eq.s32.totalorder %s16, 0
    %p110 = por %p108, %p109
    %s112 = sadd.s32 %s111, 1
    %p115 = scmp.eq.s32.totalorder %s10, 3
    %p116 = scmp.ne.s32.totalorder %s111, %s113
    %p117 = scmp.eq.s32.totalorder %s10, 0
    %p118 = por %p116, %p117
    %p119 = scmp.ne.s32.totalorder %s111, %s113
    %p120 = scmp.eq.s32.totalorder %s15, 3
    %p121 = por %p119, %p120
    %p122 = scmp.ne.s32.totalorder %s113, %s114
    %p123 = scmp.eq.s32.totalorder %s15, 0
    %p124 = por %p122, %p123
    %p125 = scmp.ne.s32.totalorder %s113, %s114
    %p126 = scmp.eq.s32.totalorder %s16, 3
    %p127 = por %p125, %p126
    %p129 = scmp.ne.s32.totalorder %s114, %s128
    %p130 = scmp.eq.s32.totalorder %s16, 0
    %p131 = por %p129, %p130
    %s132 = ssub.s32 %s17, %s29
    %s133 = ssub.s32 %s18, %s25
    %s134 = sor.u32 %s132, %s133
    %p135 = scmp.eq.s32.totalorder %s134, 0
    %s137 = sadd.s32 %s136, 1
    %s138 = scalar_select %p135, %s136, %s137
    %p141 = pneg %p135
    %p142 = scmp.eq.s32.totalorder %s10, 3
    %p143 = por %p141, %p142
    %p144 = scmp.ne.s32.totalorder %s136, %s139
    %p145 = scmp.eq.s32.totalorder %s10, 0
    %p146 = por %p144, %p145
    %p147 = scmp.ne.s32.totalorder %s136, %s139
    %p148 = scmp.eq.s32.totalorder %s15, 3
    %p149 = por %p147, %p148
    %p150 = scmp.ne.s32.totalorder %s139, %s140
    %p151 = scmp.eq.s32.totalorder %s15, 0
    %p152 = por %p150, %p151
    %p153 = scmp.ne.s32.totalorder %s139, %s140
    %p154 = scmp.eq.s32.totalorder %s16, 3
    %p155 = por %p153, %p154
    %p157 = scmp.ne.s32.totalorder %s140, %s156
    %p158 = scmp.eq.s32.totalorder %s16, 0
    %p159 = por %p157, %p158
    %p160 = scmp.le.s32.totalorder 1, %s10
    %p161 = scmp.lt.s32.totalorder %s10, 5
    %p162 = pnand %p160, %p161
    %p163 = pneg %p162
    // Predicated region
    $region9: #{tpu_custom_call.1} parent=5 // pred_check
      _
    $region10: #{tpu_custom_call.1} parent=5 // pred_check_branch
      %165 = sbr.rel (%p162) target = $region12
    $region11: #{tpu_custom_call.1} parent=5 // pred_region
      %s166 = ssub.s32 %s10, 1
      // Predicated region
      $region13: #{tpu_custom_call.1} parent=11 // pred_check
        %p167 = pneg %p103
      $region14: #{tpu_custom_call.1} parent=11 // pred_check_branch
        %169 = sbr.rel (%p167) target = $region16
      $region15: #{tpu_custom_call.1} parent=11 // pred_region
        _
      $region16: #{tpu_custom_call.1} parent=11 // pred_fallthru
        _
      // Predicated region
      $region17: #{tpu_custom_call.1} parent=11 // pred_check
        %p170 = pneg %p124
      $region18: #{tpu_custom_call.1} parent=11 // pred_check_branch
        %172 = sbr.rel (%p170) target = $region20
      $region19: #{tpu_custom_call.1} parent=11 // pred_region
        _
      $region20: #{tpu_custom_call.1} parent=11 // pred_fallthru
        _
    $region12: #{tpu_custom_call.1} parent=5 // pred_fallthru
      _
    %p173 = scmp.lt.s32.totalorder %s10, 4
    // Predicated region
    $region21: #{tpu_custom_call.1} parent=5 // pred_check
      %p174 = pneg %p173
    $region22: #{tpu_custom_call.1} parent=5 // pred_check_branch
      %176 = sbr.rel (%p174) target = $region24
    $region23: #{tpu_custom_call.1} parent=5 // pred_region
      // Predicated region
      $region25: #{tpu_custom_call.1} parent=23 // pred_check
        %p177 = pneg %p44
      $region26: #{tpu_custom_call.1} parent=23 // pred_check_branch
        %179 = sbr.rel (%p177) target = $region28
      $region27: #{tpu_custom_call.1} parent=23 // pred_region
        %s180 = smul.u32 8, %s18
        %s181 = ssub.s32 18, %s180
        %p182 = scmp.lt.s32.totalorder %s181, 8
        %s183 = scalar_select %p182, %s181, 8
        %s184 = smul.u32 128, %s183
        %s185 = smul.u32 %s184, 3
        %p186 = scmp.lt.s32.totalorder %s17, 1
        %s187 = scalar_select %p186, %s17, 1
        %p188 = scmp.lt.s32.totalorder %s180, 17
        %s189 = scalar_select %p188, %s180, 17
        %s190 = smul.addr %s189, 3
        %s191 = smul.addr %s187, 54
        %s192 = sadd.s32 %s190, %s191
        %s193 = smul.addr %s192, 8
        %s194 = scalar_lea.vmem %s0, %s193
        %s195 = smul.u32 8, %s18
        %s196 = ssub.s32 18, %s195
        %p197 = scmp.lt.s32.totalorder %s196, 8
        %s198 = scalar_select %p197, %s196, 8
        %s199 = smul.u32 128, %s198
        %s200 = smul.u32 %s199, 3
      $region28: #{tpu_custom_call.1} parent=23 // pred_fallthru
        _
      // Predicated region
      $region29: #{tpu_custom_call.1} parent=23 // pred_check
        %p201 = pneg %p76
      $region30: #{tpu_custom_call.1} parent=23 // pred_check_branch
        %203 = sbr.rel (%p201) target = $region32
      $region31: #{tpu_custom_call.1} parent=23 // pred_region
        %s204 = sadd.s32 %s18, 1
        %s205 = smul.u32 %s204, 4
        %s206 = smul.u32 2, %s205
        %p207 = scmp.lt.s32.totalorder %s17, 1
        %s208 = scalar_select %p207, %s17, 1
        %p209 = scmp.lt.s32.totalorder %s206, 17
        %s210 = scalar_select %p209, %s206, 17
        %s211 = smul.addr %s210, 3
        %s212 = smul.addr %s208, 54
        %s213 = sadd.s32 %s211, %s212
        %s214 = smul.addr %s213, 8
        %s215 = scalar_lea.vmem %s1, %s214
        %s216 = sadd.s32 %s18, 1
        %s217 = smul.u32 %s216, 4
        %s218 = smul.u32 2, %s217
      $region32: #{tpu_custom_call.1} parent=23 // pred_fallthru
        _
    $region24: #{tpu_custom_call.1} parent=5 // pred_fallthru
      _
    %p219 = scmp.le.s32.totalorder 1, %s10
    %p220 = scmp.lt.s32.totalorder %s10, 5
    %p221 = pnand %p219, %p220
    %p222 = pneg %p221
    // Predicated region
    $region33: #{tpu_custom_call.1} parent=5 // pred_check
      _
    $region34: #{tpu_custom_call.1} parent=5 // pred_check_branch
      %224 = sbr.rel (%p221) target = $region36
    $region35: #{tpu_custom_call.1} parent=5 // pred_region
      %s225 = ssub.s32 %s10, 1
      %s226 = smul.u32 8, %s20
      %s227 = ssub.s32 18, %s226
      %p228 = scmp.lt.s32.totalorder %s227, 8
      %s229 = scalar_select %p228, %s227, 8
      %s230 = smul.u32 128, %s229
      %s231 = smul.u32 %s230, 3
      %p232 = scmp.lt.s32.totalorder %s19, 1
      %s233 = scalar_select %p232, %s19, 1
      %p234 = scmp.lt.s32.totalorder %s226, 17
      %s235 = scalar_select %p234, %s226, 17
      %s236 = smul.addr %s235, 3
      %s237 = smul.addr %s233, 54
      %s238 = sadd.s32 %s236, %s237
      %s239 = smul.addr %s238, 8
      %s240 = scalar_lea.vmem %s0, %s239
      %p241 = pneg %p50
      %p242 = pneg %p47
      %s243 = sadd.s32 %s20, 1
      %s244 = smul.u32 %s243, 4
      %s245 = smul.u32 2, %s244
      %p246 = scmp.lt.s32.totalorder %s19, 1
      %s247 = scalar_select %p246, %s19, 1
      %p248 = scmp.lt.s32.totalorder %s245, 17
      %s249 = scalar_select %p248, %s245, 17
      %s250 = smul.addr %s249, 3
      %s251 = smul.addr %s247, 54
      %s252 = sadd.s32 %s250, %s251
      %s253 = smul.addr %s252, 8
      %s254 = scalar_lea.vmem %s1, %s253
      %p255 = pneg %p82
      %p256 = pneg %p79
      %p257 = pneg %p103
      %p258 = pneg %p100
      %p259 = pneg %p124
      %p260 = pneg %p121
      %p261 = pneg %p152
      %p262 = pneg %p149
      %s263 = smul.u32 8, %s20
      %p264 = scmp.lt.s32.totalorder %s19, 1
      %s265 = scalar_select %p264, %s19, 1
      %p266 = scmp.lt.s32.totalorder %s263, 15
      %s267 = scalar_select %p266, %s263, 15
      %s268 = smul.addr %s267, 2
      %s269 = smul.addr %s265, 32
      %s270 = sadd.s32 %s268, %s269
      %s271 = smul.addr %s270, 8
      %s272 = scalar_lea.vmem %s4, %s271
      %s273 = smul.u32 8, %s20
      %s274 = ssub.s32 18, %s273
      %p275 = scmp.lt.s32.totalorder %s274, 8
      %s276 = scalar_select %p275, %s274, 8
      %s277 = smul.u32 128, %s276
      %s278 = smul.u32 %s277, 3
      %p279 = scmp.lt.s32.totalorder %s19, 1
      %s280 = scalar_select %p279, %s19, 1
      %p281 = scmp.lt.s32.totalorder %s273, 17
      %s282 = scalar_select %p281, %s273, 17
      %s283 = smul.addr %s282, 3
      %s284 = smul.addr %s280, 54
      %s285 = sadd.s32 %s283, %s284
      %s286 = smul.addr %s285, 8
      %s287 = scalar_lea.vmem %s0, %s286
      %s288 = smul.u32 8, %s20
      %s289 = ssub.s32 18, %s288
      %p290 = scmp.lt.s32.totalorder %s289, 8
      %s291 = scalar_select %p290, %s289, 8
      %s292 = smul.u32 128, %s291
      %s293 = smul.u32 %s292, 3
      %s294 = sadd.s32 %s20, 1
      %s295 = smul.u32 %s294, 4
      %s296 = smul.u32 2, %s295
      %p297 = scmp.lt.s32.totalorder %s19, 1
      %s298 = scalar_select %p297, %s19, 1
      %p299 = scmp.lt.s32.totalorder %s296, 17
      %s300 = scalar_select %p299, %s296, 17
      %s301 = smul.addr %s300, 3
      %s302 = smul.addr %s298, 54
      %s303 = sadd.s32 %s301, %s302
      %s304 = smul.addr %s303, 8
      %s305 = scalar_lea.vmem %s1, %s304
      %s306 = sadd.s32 %s20, 1
      %s307 = smul.u32 %s306, 4
      %s308 = smul.u32 2, %s307
      %s309 = smul.u32 8, %s20
      %p310 = scmp.lt.s32.totalorder %s19, 1
      %s311 = scalar_select %p310, %s19, 1
      %p312 = scmp.lt.s32.totalorder %s309, 15
      %s313 = scalar_select %p312, %s309, 15
      %s314 = smul.addr %s313, 2
      %s315 = smul.addr %s311, 32
      %s316 = sadd.s32 %s314, %s315
      %s317 = smul.addr %s316, 8
      %s318 = scalar_lea.vmem %s4, %s317
      %s319 = smul.u32 8, %s20
      %v321 = vld [vmem:[%s2] sm:$0x7]
      %v322 = vld [vmem:[%s2 + $0x4] sm:$0x7]
      %v323 = vld [vmem:[%s2 + $0x8] sm:$0x7]
      %v324 = vld [vmem:[%s287] sm:$0xff]
      %v325 = vld [vmem:[%s287 + $0x8] sm:$0xff]
      %v326 = vld [vmem:[%s287 + $0x10] sm:$0xff]
      %v327 = vld [vmem:[%s287 + $0x18] sm:$0xff]
      %v328 = vld [vmem:[%s287 + $0x20] sm:$0xff]
      %v329 = vld [vmem:[%s287 + $0x28] sm:$0xff]
      %v330 = vld [vmem:[%s287 + $0x30] sm:$0xff]
      %v331 = vld [vmem:[%s287 + $0x38] sm:$0xff]
      %v332 = vld [vmem:[%s287 + $0x40] sm:$0xff]
      %v333 = vld [vmem:[%s287 + $0x48] sm:$0xff]
      %v334 = vld [vmem:[%s287 + $0x50] sm:$0xff]
      %v335 = vld [vmem:[%s287 + $0x58] sm:$0xff]
      %v336 = vld [vmem:[%s287 + $0x60] sm:$0xff]
      %v337 = vld [vmem:[%s287 + $0x68] sm:$0xff]
      %v338 = vld [vmem:[%s287 + $0x70] sm:$0xff]
      %v339 = vld [vmem:[%s287 + $0x78] sm:$0xff]
      %v340 = vld [vmem:[%s287 + $0x80] sm:$0xff]
      %v341 = vld [vmem:[%s287 + $0x88] sm:$0xff]
      %v342 = vld [vmem:[%s287 + $0x90] sm:$0xff]
      %v343 = vld [vmem:[%s287 + $0x98] sm:$0xff]
      %v344 = vld [vmem:[%s287 + $0xa0] sm:$0xff]
      %v345 = vld [vmem:[%s287 + $0xa8] sm:$0xff]
      %v346 = vld [vmem:[%s287 + $0xb0] sm:$0xff]
      %v347 = vld [vmem:[%s287 + $0xb8] sm:$0xff]
      %v348 = vlaneseq
      %v349 = vshrl.u32 %v348, 7
      %v350 = vsub.s32 0, %v349
      %v351 = vrot.slane %v321, %v350
      %v352 = vmul.f32 %v324, %v351
      %v353 = vmul.f32 %v325, %v351
      %v354 = vmul.f32 %v326, %v351
      %v355 = vmul.f32 %v327, %v351
      %v356 = vmul.f32 %v328, %v351
      %v357 = vmul.f32 %v329, %v351
      %v358 = vmul.f32 %v330, %v351
      %v359 = vmul.f32 %v331, %v351
      %v360 = vmul.f32 %v332, %v351
      %v361 = vmul.f32 %v333, %v351
      %v362 = vmul.f32 %v334, %v351
      %v363 = vmul.f32 %v335, %v351
      %v364 = vmul.f32 %v336, %v351
      %v365 = vmul.f32 %v337, %v351
      %v366 = vmul.f32 %v338, %v351
      %v367 = vmul.f32 %v339, %v351
      %v368 = vmul.f32 %v340, %v351
      %v369 = vmul.f32 %v341, %v351
      %v370 = vmul.f32 %v342, %v351
      %v371 = vmul.f32 %v343, %v351
      %v372 = vmul.f32 %v344, %v351
      %v373 = vmul.f32 %v345, %v351
      %v374 = vmul.f32 %v346, %v351
      %v375 = vmul.f32 %v347, %v351
      %vm376 = vcmask 31744
      %377 = vst.msk [vmem:[#allocation2] sm:$0xff] %vm376, %v352
      %378 = vst.msk [vmem:[#allocation2 + $0x8] sm:$0xff] %vm376, %v353
      %379 = vst.msk [vmem:[#allocation2 + $0x10] sm:$0xff] %vm376, %v354
      %380 = vst.msk [vmem:[#allocation2 + $0x18] sm:$0xff] %vm376, %v355
      %381 = vst.msk [vmem:[#allocation2 + $0x20] sm:$0xff] %vm376, %v356
      %382 = vst.msk [vmem:[#allocation2 + $0x28] sm:$0xff] %vm376, %v357
      %383 = vst.msk [vmem:[#allocation2 + $0x30] sm:$0xff] %vm376, %v358
      %384 = vst.msk [vmem:[#allocation2 + $0x38] sm:$0xff] %vm376, %v359
      %385 = vst.msk [vmem:[#allocation2 + $0x40] sm:$0xff] %vm376, %v360
      %386 = vst.msk [vmem:[#allocation2 + $0x48] sm:$0xff] %vm376, %v361
      %387 = vst.msk [vmem:[#allocation2 + $0x50] sm:$0xff] %vm376, %v362
      %388 = vst.msk [vmem:[#allocation2 + $0x58] sm:$0xff] %vm376, %v363
      %389 = vst.msk [vmem:[#allocation2 + $0x60] sm:$0xff] %vm376, %v364
      %390 = vst.msk [vmem:[#allocation2 + $0x68] sm:$0xff] %vm376, %v365
      %391 = vst.msk [vmem:[#allocation2 + $0x70] sm:$0xff] %vm376, %v366
      %392 = vst.msk [vmem:[#allocation2 + $0x78] sm:$0xff] %vm376, %v367
      %393 = vst.msk [vmem:[#allocation2 + $0x80] sm:$0xff] %vm376, %v368
      %394 = vst.msk [vmem:[#allocation2 + $0x88] sm:$0xff] %vm376, %v369
      %395 = vst.msk [vmem:[#allocation2 + $0x90] sm:$0xff] %vm376, %v370
      %396 = vst.msk [vmem:[#allocation2 + $0x98] sm:$0xff] %vm376, %v371
      %397 = vst.msk [vmem:[#allocation2 + $0xa0] sm:$0xff] %vm376, %v372
      %398 = vst.msk [vmem:[#allocation2 + $0xa8] sm:$0xff] %vm376, %v373
      %399 = vst.msk [vmem:[#allocation2 + $0xb0] sm:$0xff] %vm376, %v374
      %400 = vst.msk [vmem:[#allocation2 + $0xb8] sm:$0xff] %vm376, %v375
      %v401 = vld [vmem:[#allocation2] sm:$0xff]
      %v402 = vld [vmem:[#allocation2 + $0x8] sm:$0xff]
      %v403 = vld [vmem:[#allocation2 + $0x10] sm:$0xff]
      %v404 = vld [vmem:[#allocation2 + $0x18] sm:$0xff]
      %v405 = vld [vmem:[#allocation2 + $0x20] sm:$0xff]
      %v406 = vld [vmem:[#allocation2 + $0x28] sm:$0xff]
      %v407 = vld [vmem:[#allocation2 + $0x30] sm:$0xff]
      %v408 = vld [vmem:[#allocation2 + $0x38] sm:$0xff]
      %v409 = vld [vmem:[#allocation2 + $0x40] sm:$0xff]
      %v410 = vld [vmem:[#allocation2 + $0x48] sm:$0xff]
      %v411 = vld [vmem:[#allocation2 + $0x50] sm:$0xff]
      %v412 = vld [vmem:[#allocation2 + $0x58] sm:$0xff]
      %v413 = vld [vmem:[#allocation2 + $0x60] sm:$0xff]
      %v414 = vld [vmem:[#allocation2 + $0x68] sm:$0xff]
      %v415 = vld [vmem:[#allocation2 + $0x70] sm:$0xff]
      %v416 = vld [vmem:[#allocation2 + $0x78] sm:$0xff]
      %v417 = vld [vmem:[#allocation2 + $0x80] sm:$0xff]
      %v418 = vld [vmem:[#allocation2 + $0x88] sm:$0xff]
      %v419 = vld [vmem:[#allocation2 + $0x90] sm:$0xff]
      %v420 = vld [vmem:[#allocation2 + $0x98] sm:$0xff]
      %v421 = vld [vmem:[#allocation2 + $0xa0] sm:$0xff]
      %v422 = vlaneseq
      %v423 = vshrl.u32 %v422, 7
      %v424 = vsub.s32 0, %v423
      %v425 = vrot.slane %v322, %v424
      %v426 = vmul.f32 %v327, %v425
      %v427 = vmul.f32 %v328, %v425
      %v428 = vmul.f32 %v329, %v425
      %v429 = vmul.f32 %v330, %v425
      %v430 = vmul.f32 %v331, %v425
      %v431 = vmul.f32 %v332, %v425
      %v432 = vmul.f32 %v333, %v425
      %v433 = vmul.f32 %v334, %v425
      %v434 = vmul.f32 %v335, %v425
      %v435 = vmul.f32 %v336, %v425
      %v436 = vmul.f32 %v337, %v425
      %v437 = vmul.f32 %v338, %v425
      %v438 = vmul.f32 %v339, %v425
      %v439 = vmul.f32 %v340, %v425
      %v440 = vmul.f32 %v341, %v425
      %v441 = vmul.f32 %v342, %v425
      %v442 = vmul.f32 %v343, %v425
      %v443 = vmul.f32 %v344, %v425
      %v444 = vmul.f32 %v345, %v425
      %v445 = vmul.f32 %v346, %v425
      %v446 = vmul.f32 %v347, %v425
      %v447 = vadd.f32 %v401, %v426
      %v448 = vadd.f32 %v402, %v427
      %v449 = vadd.f32 %v403, %v428
      %v450 = vadd.f32 %v404, %v429
      %v451 = vadd.f32 %v405, %v430
      %v452 = vadd.f32 %v406, %v431
      %v453 = vadd.f32 %v407, %v432
      %v454 = vadd.f32 %v408, %v433
      %v455 = vadd.f32 %v409, %v434
      %v456 = vadd.f32 %v410, %v435
      %v457 = vadd.f32 %v411, %v436
      %v458 = vadd.f32 %v412, %v437
      %v459 = vadd.f32 %v413, %v438
      %v460 = vadd.f32 %v414, %v439
      %v461 = vadd.f32 %v415, %v440
      %v462 = vadd.f32 %v416, %v441
      %v463 = vadd.f32 %v417, %v442
      %v464 = vadd.f32 %v418, %v443
      %v465 = vadd.f32 %v419, %v444
      %v466 = vadd.f32 %v420, %v445
      %v467 = vadd.f32 %v421, %v446
      %468 = vst.msk [vmem:[#allocation2] sm:$0xff] %vm376, %v447
      %469 = vst.msk [vmem:[#allocation2 + $0x8] sm:$0xff] %vm376, %v448
      %470 = vst.msk [vmem:[#allocation2 + $0x10] sm:$0xff] %vm376, %v449
      %471 = vst.msk [vmem:[#allocation2 + $0x18] sm:$0xff] %vm376, %v450
      %472 = vst.msk [vmem:[#allocation2 + $0x20] sm:$0xff] %vm376, %v451
      %473 = vst.msk [vmem:[#allocation2 + $0x28] sm:$0xff] %vm376, %v452
      %474 = vst.msk [vmem:[#allocation2 + $0x30] sm:$0xff] %vm376, %v453
      %475 = vst.msk [vmem:[#allocation2 + $0x38] sm:$0xff] %vm376, %v454
      %476 = vst.msk [vmem:[#allocation2 + $0x40] sm:$0xff] %vm376, %v455
      %477 = vst.msk [vmem:[#allocation2 + $0x48] sm:$0xff] %vm376, %v456
      %478 = vst.msk [vmem:[#allocation2 + $0x50] sm:$0xff] %vm376, %v457
      %479 = vst.msk [vmem:[#allocation2 + $0x58] sm:$0xff] %vm376, %v458
      %480 = vst.msk [vmem:[#allocation2 + $0x60] sm:$0xff] %vm376, %v459
      %481 = vst.msk [vmem:[#allocation2 + $0x68] sm:$0xff] %vm376, %v460
      %482 = vst.msk [vmem:[#allocation2 + $0x70] sm:$0xff] %vm376, %v461
      %483 = vst.msk [vmem:[#allocation2 + $0x78] sm:$0xff] %vm376, %v462
      %484 = vst.msk [vmem:[#allocation2 + $0x80] sm:$0xff] %vm376, %v463
      %485 = vst.msk [vmem:[#allocation2 + $0x88] sm:$0xff] %vm376, %v464
      %486 = vst.msk [vmem:[#allocation2 + $0x90] sm:$0xff] %vm376, %v465
      %487 = vst.msk [vmem:[#allocation2 + $0x98] sm:$0xff] %vm376, %v466
      %488 = vst.msk [vmem:[#allocation2 + $0xa0] sm:$0xff] %vm376, %v467
      %v489 = vld [vmem:[#allocation2] sm:$0xff]
      %v490 = vld [vmem:[#allocation2 + $0x8] sm:$0xff]
      %v491 = vld [vmem:[#allocation2 + $0x10] sm:$0xff]
      %v492 = vld [vmem:[#allocation2 + $0x18] sm:$0xff]
      %v493 = vld [vmem:[#allocation2 + $0x20] sm:$0xff]
      %v494 = vld [vmem:[#allocation2 + $0x28] sm:$0xff]
      %v495 = vld [vmem:[#allocation2 + $0x30] sm:$0xff]
      %v496 = vld [vmem:[#allocation2 + $0x38] sm:$0xff]
      %v497 = vld [vmem:[#allocation2 + $0x40] sm:$0xff]
      %v498 = vld [vmem:[#allocation2 + $0x48] sm:$0xff]
      %v499 = vld [vmem:[#allocation2 + $0x50] sm:$0xff]
      %v500 = vld [vmem:[#allocation2 + $0x58] sm:$0xff]
      %v501 = vld [vmem:[#allocation2 + $0x60] sm:$0xff]
      %v502 = vld [vmem:[#allocation2 + $0x68] sm:$0xff]
      %v503 = vld [vmem:[#allocation2 + $0x70] sm:$0xff]
      %v504 = vld [vmem:[#allocation2 + $0x78] sm:$0xff]
      %v505 = vld [vmem:[#allocation2 + $0x80] sm:$0xff]
      %v506 = vld [vmem:[#allocation2 + $0x88] sm:$0xff]
      %v507 = vlaneseq
      %v508 = vshrl.u32 %v507, 7
      %v509 = vsub.s32 0, %v508
      %v510 = vrot.slane %v323, %v509
      %v511 = vmul.f32 %v330, %v510
      %v512 = vmul.f32 %v331, %v510
      %v513 = vmul.f32 %v332, %v510
      %v514 = vmul.f32 %v333, %v510
      %v515 = vmul.f32 %v334, %v510
      %v516 = vmul.f32 %v335, %v510
      %v517 = vmul.f32 %v336, %v510
      %v518 = vmul.f32 %v337, %v510
      %v519 = vmul.f32 %v338, %v510
      %v520 = vmul.f32 %v339, %v510
      %v521 = vmul.f32 %v340, %v510
      %v522 = vmul.f32 %v341, %v510
      %v523 = vmul.f32 %v342, %v510
      %v524 = vmul.f32 %v343, %v510
      %v525 = vmul.f32 %v344, %v510
      %v526 = vmul.f32 %v345, %v510
      %v527 = vmul.f32 %v346, %v510
      %v528 = vmul.f32 %v347, %v510
      %v529 = vadd.f32 %v489, %v511
      %v530 = vadd.f32 %v490, %v512
      %v531 = vadd.f32 %v491, %v513
      %v532 = vadd.f32 %v492, %v514
      %v533 = vadd.f32 %v493, %v515
      %v534 = vadd.f32 %v494, %v516
      %v535 = vadd.f32 %v495, %v517
      %v536 = vadd.f32 %v496, %v518
      %v537 = vadd.f32 %v497, %v519
      %v538 = vadd.f32 %v498, %v520
      %v539 = vadd.f32 %v499, %v521
      %v540 = vadd.f32 %v500, %v522
      %v541 = vadd.f32 %v501, %v523
      %v542 = vadd.f32 %v502, %v524
      %v543 = vadd.f32 %v503, %v525
      %v544 = vadd.f32 %v504, %v526
      %v545 = vadd.f32 %v505, %v527
      %v546 = vadd.f32 %v506, %v528
      %547 = vst.msk [vmem:[#allocation2] sm:$0xff] %vm376, %v529
      %548 = vst.msk [vmem:[#allocation2 + $0x8] sm:$0xff] %vm376, %v530
      %549 = vst.msk [vmem:[#allocation2 + $0x10] sm:$0xff] %vm376, %v531
      %550 = vst.msk [vmem:[#allocation2 + $0x18] sm:$0xff] %vm376, %v532
      %551 = vst.msk [vmem:[#allocation2 + $0x20] sm:$0xff] %vm376, %v533
      %552 = vst.msk [vmem:[#allocation2 + $0x28] sm:$0xff] %vm376, %v534
      %553 = vst.msk [vmem:[#allocation2 + $0x30] sm:$0xff] %vm376, %v535
      %554 = vst.msk [vmem:[#allocation2 + $0x38] sm:$0xff] %vm376, %v536
      %555 = vst.msk [vmem:[#allocation2 + $0x40] sm:$0xff] %vm376, %v537
      %556 = vst.msk [vmem:[#allocation2 + $0x48] sm:$0xff] %vm376, %v538
      %557 = vst.msk [vmem:[#allocation2 + $0x50] sm:$0xff] %vm376, %v539
      %558 = vst.msk [vmem:[#allocation2 + $0x58] sm:$0xff] %vm376, %v540
      %559 = vst.msk [vmem:[#allocation2 + $0x60] sm:$0xff] %vm376, %v541
      %560 = vst.msk [vmem:[#allocation2 + $0x68] sm:$0xff] %vm376, %v542
      %561 = vst.msk [vmem:[#allocation2 + $0x70] sm:$0xff] %vm376, %v543
      %562 = vst.msk [vmem:[#allocation2 + $0x78] sm:$0xff] %vm376, %v544
      %563 = vst.msk [vmem:[#allocation2 + $0x80] sm:$0xff] %vm376, %v545
      %564 = vst.msk [vmem:[#allocation2 + $0x88] sm:$0xff] %vm376, %v546
      %v565 = vrot.slane %v324, 1
      %v566 = vrot.slane %v327, 1
      %v567 = vrot.slane %v330, 1
      %v568 = vrot.slane %v333, 1
      %v569 = vrot.slane %v336, 1
      %v570 = vrot.slane %v339, 1
      %v571 = vrot.slane %v342, 1
      %v572 = vrot.slane %v345, 1
      %v573 = vrot.slane %v325, 1
      %v574 = vrot.slane %v328, 1
      %v575 = vrot.slane %v331, 1
      %v576 = vrot.slane %v334, 1
      %v577 = vrot.slane %v337, 1
      %v578 = vrot.slane %v340, 1
      %v579 = vrot.slane %v343, 1
      %v580 = vrot.slane %v346, 1
      %v581 = vrot.slane %v326, 1
      %v582 = vrot.slane %v329, 1
      %v583 = vrot.slane %v332, 1
      %v584 = vrot.slane %v335, 1
      %v585 = vrot.slane %v338, 1
      %v586 = vrot.slane %v341, 1
      %v587 = vrot.slane %v344, 1
      %v588 = vrot.slane %v347, 1
      %v589 = vlaneseq
      %v590 = vshrl.u32 %v589, 7
      %vm591 = vcmp.lt.s32.totalorder %v590, 7
      %v592 = vsel %vm591, %v573, %v581
      %v593 = vsel %vm591, %v574, %v582
      %v594 = vsel %vm591, %v575, %v583
      %v595 = vsel %vm591, %v576, %v584
      %v596 = vsel %vm591, %v577, %v585
      %v597 = vsel %vm591, %v578, %v586
      %v598 = vsel %vm591, %v579, %v587
      %v599 = vsel %vm591, %v580, %v588
      %v600 = vsel %vm591, %v565, %v573
      %v601 = vsel %vm591, %v566, %v574
      %v602 = vsel %vm591, %v567, %v575
      %v603 = vsel %vm591, %v568, %v576
      %v604 = vsel %vm591, %v569, %v577
      %v605 = vsel %vm591, %v570, %v578
      %v606 = vsel %vm591, %v571, %v579
      %v607 = vsel %vm591, %v572, %v580
      %v608 = vsel %vm591, %v581, %v565
      %v609 = vsel %vm591, %v582, %v566
      %v610 = vsel %vm591, %v583, %v567
      %v611 = vsel %vm591, %v584, %v568
      %v612 = vsel %vm591, %v585, %v569
      %v613 = vsel %vm591, %v586, %v570
      %v614 = vsel %vm591, %v587, %v571
      %v615 = vsel %vm591, %v588, %v572
      %v616 = vld [vmem:[#allocation2] sm:$0xff]
      %v617 = vld [vmem:[#allocation2 + $0x8] sm:$0xff]
      %v618 = vld [vmem:[#allocation2 + $0x10] sm:$0xff]
      %v619 = vld [vmem:[#allocation2 + $0x18] sm:$0xff]
      %v620 = vld [vmem:[#allocation2 + $0x20] sm:$0xff]
      %v621 = vld [vmem:[#allocation2 + $0x28] sm:$0xff]
      %v622 = vld [vmem:[#allocation2 + $0x30] sm:$0xff]
      %v623 = vld [vmem:[#allocation2 + $0x38] sm:$0xff]
      %v624 = vld [vmem:[#allocation2 + $0x40] sm:$0xff]
      %v625 = vld [vmem:[#allocation2 + $0x48] sm:$0xff]
      %v626 = vld [vmem:[#allocation2 + $0x50] sm:$0xff]
      %v627 = vld [vmem:[#allocation2 + $0x58] sm:$0xff]
      %v628 = vld [vmem:[#allocation2 + $0x60] sm:$0xff]
      %v629 = vld [vmem:[#allocation2 + $0x68] sm:$0xff]
      %v630 = vld [vmem:[#allocation2 + $0x70] sm:$0xff]
      %v631 = vld [vmem:[#allocation2 + $0x78] sm:$0xff]
      %v632 = vld [vmem:[#allocation2 + $0x80] sm:$0xff]
      %v633 = vld [vmem:[#allocation2 + $0x88] sm:$0xff]
      %v634 = vld [vmem:[#allocation2 + $0x90] sm:$0xff]
      %v635 = vld [vmem:[#allocation2 + $0x98] sm:$0xff]
      %v636 = vld [vmem:[#allocation2 + $0xa0] sm:$0xff]
      %v637 = vld [vmem:[#allocation2 + $0xa8] sm:$0xff]
      %v638 = vld [vmem:[#allocation2 + $0xb0] sm:$0xff]
      %v639 = vld [vmem:[#allocation2 + $0xb8] sm:$0xff]
      %v640 = vlaneseq
      %v641 = vshrl.u32 %v640, 7
      %v642 = vsub.s32 1, %v641
      %v643 = vrot.slane %v321, %v642
      %v644 = vmul.f32 %v600, %v643
      %v645 = vmul.f32 %v592, %v643
      %v646 = vmul.f32 %v608, %v643
      %v647 = vmul.f32 %v601, %v643
      %v648 = vmul.f32 %v593, %v643
      %v649 = vmul.f32 %v609, %v643
      %v650 = vmul.f32 %v602, %v643
      %v651 = vmul.f32 %v594, %v643
      %v652 = vmul.f32 %v610, %v643
      %v653 = vmul.f32 %v603, %v643
      %v654 = vmul.f32 %v595, %v643
      %v655 = vmul.f32 %v611, %v643
      %v656 = vmul.f32 %v604, %v643
      %v657 = vmul.f32 %v596, %v643
      %v658 = vmul.f32 %v612, %v643
      %v659 = vmul.f32 %v605, %v643
      %v660 = vmul.f32 %v597, %v643
      %v661 = vmul.f32 %v613, %v643
      %v662 = vmul.f32 %v606, %v643
      %v663 = vmul.f32 %v598, %v643
      %v664 = vmul.f32 %v614, %v643
      %v665 = vmul.f32 %v607, %v643
      %v666 = vmul.f32 %v599, %v643
      %v667 = vmul.f32 %v615, %v643
      %v668 = vadd.f32 %v616, %v644
      %v669 = vadd.f32 %v617, %v645
      %v670 = vadd.f32 %v618, %v646
      %v671 = vadd.f32 %v619, %v647
      %v672 = vadd.f32 %v620, %v648
      %v673 = vadd.f32 %v621, %v649
      %v674 = vadd.f32 %v622, %v650
      %v675 = vadd.f32 %v623, %v651
      %v676 = vadd.f32 %v624, %v652
      %v677 = vadd.f32 %v625, %v653
      %v678 = vadd.f32 %v626, %v654
      %v679 = vadd.f32 %v627, %v655
      %v680 = vadd.f32 %v628, %v656
      %v681 = vadd.f32 %v629, %v657
      %v682 = vadd.f32 %v630, %v658
      %v683 = vadd.f32 %v631, %v659
      %v684 = vadd.f32 %v632, %v660
      %v685 = vadd.f32 %v633, %v661
      %v686 = vadd.f32 %v634, %v662
      %v687 = vadd.f32 %v635, %v663
      %v688 = vadd.f32 %v636, %v664
      %v689 = vadd.f32 %v637, %v665
      %v690 = vadd.f32 %v638, %v666
      %v691 = vadd.f32 %v639, %v667
      %692 = vst.msk [vmem:[#allocation2] sm:$0xff] %vm376, %v668
      %693 = vst.msk [vmem:[#allocation2 + $0x8] sm:$0xff] %vm376, %v669
      %694 = vst.msk [vmem:[#allocation2 + $0x10] sm:$0xff] %vm376, %v670
      %695 = vst.msk [vmem:[#allocation2 + $0x18] sm:$0xff] %vm376, %v671
      %696 = vst.msk [vmem:[#allocation2 + $0x20] sm:$0xff] %vm376, %v672
      %697 = vst.msk [vmem:[#allocation2 + $0x28] sm:$0xff] %vm376, %v673
      %698 = vst.msk [vmem:[#allocation2 + $0x30] sm:$0xff] %vm376, %v674
      %699 = vst.msk [vmem:[#allocation2 + $0x38] sm:$0xff] %vm376, %v675
      %700 = vst.msk [vmem:[#allocation2 + $0x40] sm:$0xff] %vm376, %v676
      %701 = vst.msk [vmem:[#allocation2 + $0x48] sm:$0xff] %vm376, %v677
      %702 = vst.msk [vmem:[#allocation2 + $0x50] sm:$0xff] %vm376, %v678
      %703 = vst.msk [vmem:[#allocation2 + $0x58] sm:$0xff] %vm376, %v679
      %704 = vst.msk [vmem:[#allocation2 + $0x60] sm:$0xff] %vm376, %v680
      %705 = vst.msk [vmem:[#allocation2 + $0x68] sm:$0xff] %vm376, %v681
      %706 = vst.msk [vmem:[#allocation2 + $0x70] sm:$0xff] %vm376, %v682
      %707 = vst.msk [vmem:[#allocation2 + $0x78] sm:$0xff] %vm376, %v683
      %708 = vst.msk [vmem:[#allocation2 + $0x80] sm:$0xff] %vm376, %v684
      %709 = vst.msk [vmem:[#allocation2 + $0x88] sm:$0xff] %vm376, %v685
      %710 = vst.msk [vmem:[#allocation2 + $0x90] sm:$0xff] %vm376, %v686
      %711 = vst.msk [vmem:[#allocation2 + $0x98] sm:$0xff] %vm376, %v687
      %712 = vst.msk [vmem:[#allocation2 + $0xa0] sm:$0xff] %vm376, %v688
      %713 = vst.msk [vmem:[#allocation2 + $0xa8] sm:$0xff] %vm376, %v689
      %714 = vst.msk [vmem:[#allocation2 + $0xb0] sm:$0xff] %vm376, %v690
      %715 = vst.msk [vmem:[#allocation2 + $0xb8] sm:$0xff] %vm376, %v691
      %v716 = vld [vmem:[#allocation2] sm:$0xff]
      %v717 = vld [vmem:[#allocation2 + $0x8] sm:$0xff]
      %v718 = vld [vmem:[#allocation2 + $0x10] sm:$0xff]
      %v719 = vld [vmem:[#allocation2 + $0x18] sm:$0xff]
      %v720 = vld [vmem:[#allocation2 + $0x20] sm:$0xff]
      %v721 = vld [vmem:[#allocation2 + $0x28] sm:$0xff]
      %v722 = vld [vmem:[#allocation2 + $0x30] sm:$0xff]
      %v723 = vld [vmem:[#allocation2 + $0x38] sm:$0xff]
      %v724 = vld [vmem:[#allocation2 + $0x40] sm:$0xff]
      %v725 = vld [vmem:[#allocation2 + $0x48] sm:$0xff]
      %v726 = vld [vmem:[#allocation2 + $0x50] sm:$0xff]
      %v727 = vld [vmem:[#allocation2 + $0x58] sm:$0xff]
      %v728 = vld [vmem:[#allocation2 + $0x60] sm:$0xff]
      %v729 = vld [vmem:[#allocation2 + $0x68] sm:$0xff]
      %v730 = vld [vmem:[#allocation2 + $0x70] sm:$0xff]
      %v731 = vld [vmem:[#allocation2 + $0x78] sm:$0xff]
      %v732 = vld [vmem:[#allocation2 + $0x80] sm:$0xff]
      %v733 = vld [vmem:[#allocation2 + $0x88] sm:$0xff]
      %v734 = vld [vmem:[#allocation2 + $0x90] sm:$0xff]
      %v735 = vld [vmem:[#allocation2 + $0x98] sm:$0xff]
      %v736 = vld [vmem:[#allocation2 + $0xa0] sm:$0xff]
      %v737 = vlaneseq
      %v738 = vshrl.u32 %v737, 7
      %v739 = vsub.s32 1, %v738
      %v740 = vrot.slane %v322, %v739
      %v741 = vmul.f32 %v601, %v740
      %v742 = vmul.f32 %v593, %v740
      %v743 = vmul.f32 %v609, %v740
      %v744 = vmul.f32 %v602, %v740
      %v745 = vmul.f32 %v594, %v740
      %v746 = vmul.f32 %v610, %v740
      %v747 = vmul.f32 %v603, %v740
      %v748 = vmul.f32 %v595, %v740
      %v749 = vmul.f32 %v611, %v740
      %v750 = vmul.f32 %v604, %v740
      %v751 = vmul.f32 %v596, %v740
      %v752 = vmul.f32 %v612, %v740
      %v753 = vmul.f32 %v605, %v740
      %v754 = vmul.f32 %v597, %v740
      %v755 = vmul.f32 %v613, %v740
      %v756 = vmul.f32 %v606, %v740
      %v757 = vmul.f32 %v598, %v740
      %v758 = vmul.f32 %v614, %v740
      %v759 = vmul.f32 %v607, %v740
      %v760 = vmul.f32 %v599, %v740
      %v761 = vmul.f32 %v615, %v740
      %v762 = vadd.f32 %v716, %v741
      %v763 = vadd.f32 %v717, %v742
      %v764 = vadd.f32 %v718, %v743
      %v765 = vadd.f32 %v719, %v744
      %v766 = vadd.f32 %v720, %v745
      %v767 = vadd.f32 %v721, %v746
      %v768 = vadd.f32 %v722, %v747
      %v769 = vadd.f32 %v723, %v748
      %v770 = vadd.f32 %v724, %v749
      %v771 = vadd.f32 %v725, %v750
      %v772 = vadd.f32 %v726, %v751
      %v773 = vadd.f32 %v727, %v752
      %v774 = vadd.f32 %v728, %v753
      %v775 = vadd.f32 %v729, %v754
      %v776 = vadd.f32 %v730, %v755
      %v777 = vadd.f32 %v731, %v756
      %v778 = vadd.f32 %v732, %v757
      %v779 = vadd.f32 %v733, %v758
      %v780 = vadd.f32 %v734, %v759
      %v781 = vadd.f32 %v735, %v760
      %v782 = vadd.f32 %v736, %v761
      %783 = vst.msk [vmem:[#allocation2] sm:$0xff] %vm376, %v762
      %784 = vst.msk [vmem:[#allocation2 + $0x8] sm:$0xff] %vm376, %v763
      %785 = vst.msk [vmem:[#allocation2 + $0x10] sm:$0xff] %vm376, %v764
      %786 = vst.msk [vmem:[#allocation2 + $0x18] sm:$0xff] %vm376, %v765
      %787 = vst.msk [vmem:[#allocation2 + $0x20] sm:$0xff] %vm376, %v766
      %788 = vst.msk [vmem:[#allocation2 + $0x28] sm:$0xff] %vm376, %v767
      %789 = vst.msk [vmem:[#allocation2 + $0x30] sm:$0xff] %vm376, %v768
      %790 = vst.msk [vmem:[#allocation2 + $0x38] sm:$0xff] %vm376, %v769
      %791 = vst.msk [vmem:[#allocation2 + $0x40] sm:$0xff] %vm376, %v770
      %792 = vst.msk [vmem:[#allocation2 + $0x48] sm:$0xff] %vm376, %v771
      %793 = vst.msk [vmem:[#allocation2 + $0x50] sm:$0xff] %vm376, %v772
      %794 = vst.msk [vmem:[#allocation2 + $0x58] sm:$0xff] %vm376, %v773
      %795 = vst.msk [vmem:[#allocation2 + $0x60] sm:$0xff] %vm376, %v774
      %796 = vst.msk [vmem:[#allocation2 + $0x68] sm:$0xff] %vm376, %v775
      %797 = vst.msk [vmem:[#allocation2 + $0x70] sm:$0xff] %vm376, %v776
      %798 = vst.msk [vmem:[#allocation2 + $0x78] sm:$0xff] %vm376, %v777
      %799 = vst.msk [vmem:[#allocation2 + $0x80] sm:$0xff] %vm376, %v778
      %800 = vst.msk [vmem:[#allocation2 + $0x88] sm:$0xff] %vm376, %v779
      %801 = vst.msk [vmem:[#allocation2 + $0x90] sm:$0xff] %vm376, %v780
      %802 = vst.msk [vmem:[#allocation2 + $0x98] sm:$0xff] %vm376, %v781
      %803 = vst.msk [vmem:[#allocation2 + $0xa0] sm:$0xff] %vm376, %v782
      %v804 = vld [vmem:[#allocation2] sm:$0xff]
      %v805 = vld [vmem:[#allocation2 + $0x8] sm:$0xff]
      %v806 = vld [vmem:[#allocation2 + $0x10] sm:$0xff]
      %v807 = vld [vmem:[#allocation2 + $0x18] sm:$0xff]
      %v808 = vld [vmem:[#allocation2 + $0x20] sm:$0xff]
      %v809 = vld [vmem:[#allocation2 + $0x28] sm:$0xff]
      %v810 = vld [vmem:[#allocation2 + $0x30] sm:$0xff]
      %v811 = vld [vmem:[#allocation2 + $0x38] sm:$0xff]
      %v812 = vld [vmem:[#allocation2 + $0x40] sm:$0xff]
      %v813 = vld [vmem:[#allocation2 + $0x48] sm:$0xff]
      %v814 = vld [vmem:[#allocation2 + $0x50] sm:$0xff]
      %v815 = vld [vmem:[#allocation2 + $0x58] sm:$0xff]
      %v816 = vld [vmem:[#allocation2 + $0x60] sm:$0xff]
      %v817 = vld [vmem:[#allocation2 + $0x68] sm:$0xff]
      %v818 = vld [vmem:[#allocation2 + $0x70] sm:$0xff]
      %v819 = vld [vmem:[#allocation2 + $0x78] sm:$0xff]
      %v820 = vld [vmem:[#allocation2 + $0x80] sm:$0xff]
      %v821 = vld [vmem:[#allocation2 + $0x88] sm:$0xff]
      %v822 = vlaneseq
      %v823 = vshrl.u32 %v822, 7
      %v824 = vsub.s32 1, %v823
      %v825 = vrot.slane %v323, %v824
      %v826 = vmul.f32 %v602, %v825
      %v827 = vmul.f32 %v594, %v825
      %v828 = vmul.f32 %v610, %v825
      %v829 = vmul.f32 %v603, %v825
      %v830 = vmul.f32 %v595, %v825
      %v831 = vmul.f32 %v611, %v825
      %v832 = vmul.f32 %v604, %v825
      %v833 = vmul.f32 %v596, %v825
      %v834 = vmul.f32 %v612, %v825
      %v835 = vmul.f32 %v605, %v825
      %v836 = vmul.f32 %v597, %v825
      %v837 = vmul.f32 %v613, %v825
      %v838 = vmul.f32 %v606, %v825
      %v839 = vmul.f32 %v598, %v825
      %v840 = vmul.f32 %v614, %v825
      %v841 = vmul.f32 %v607, %v825
      %v842 = vmul.f32 %v599, %v825
      %v843 = vmul.f32 %v615, %v825
      %v844 = vadd.f32 %v804, %v826
      %v845 = vadd.f32 %v805, %v827
      %v846 = vadd.f32 %v806, %v828
      %v847 = vadd.f32 %v807, %v829
      %v848 = vadd.f32 %v808, %v830
      %v849 = vadd.f32 %v809, %v831
      %v850 = vadd.f32 %v810, %v832
      %v851 = vadd.f32 %v811, %v833
      %v852 = vadd.f32 %v812, %v834
      %v853 = vadd.f32 %v813, %v835
      %v854 = vadd.f32 %v814, %v836
      %v855 = vadd.f32 %v815, %v837
      %v856 = vadd.f32 %v816, %v838
      %v857 = vadd.f32 %v817, %v839
      %v858 = vadd.f32 %v818, %v840
      %v859 = vadd.f32 %v819, %v841
      %v860 = vadd.f32 %v820, %v842
      %v861 = vadd.f32 %v821, %v843
      %862 = vst.msk [vmem:[#allocation2] sm:$0xff] %vm376, %v844
      %863 = vst.msk [vmem:[#allocation2 + $0x8] sm:$0xff] %vm376, %v845
      %864 = vst.msk [vmem:[#allocation2 + $0x10] sm:$0xff] %vm376, %v846
      %865 = vst.msk [vmem:[#allocation2 + $0x18] sm:$0xff] %vm376, %v847
      %866 = vst.msk [vmem:[#allocation2 + $0x20] sm:$0xff] %vm376, %v848
      %867 = vst.msk [vmem:[#allocation2 + $0x28] sm:$0xff] %vm376, %v849
      %868 = vst.msk [vmem:[#allocation2 + $0x30] sm:$0xff] %vm376, %v850
      %869 = vst.msk [vmem:[#allocation2 + $0x38] sm:$0xff] %vm376, %v851
      %870 = vst.msk [vmem:[#allocation2 + $0x40] sm:$0xff] %vm376, %v852
      %871 = vst.msk [vmem:[#allocation2 + $0x48] sm:$0xff] %vm376, %v853
      %872 = vst.msk [vmem:[#allocation2 + $0x50] sm:$0xff] %vm376, %v854
      %873 = vst.msk [vmem:[#allocation2 + $0x58] sm:$0xff] %vm376, %v855
      %874 = vst.msk [vmem:[#allocation2 + $0x60] sm:$0xff] %vm376, %v856
      %875 = vst.msk [vmem:[#allocation2 + $0x68] sm:$0xff] %vm376, %v857
      %876 = vst.msk [vmem:[#allocation2 + $0x70] sm:$0xff] %vm376, %v858
      %877 = vst.msk [vmem:[#allocation2 + $0x78] sm:$0xff] %vm376, %v859
      %878 = vst.msk [vmem:[#allocation2 + $0x80] sm:$0xff] %vm376, %v860
      %879 = vst.msk [vmem:[#allocation2 + $0x88] sm:$0xff] %vm376, %v861
      %v880 = vrot.slane %v324, 2
      %v881 = vrot.slane %v327, 2
      %v882 = vrot.slane %v330, 2
      %v883 = vrot.slane %v333, 2
      %v884 = vrot.slane %v336, 2
      %v885 = vrot.slane %v339, 2
      %v886 = vrot.slane %v342, 2
      %v887 = vrot.slane %v345, 2
      %v888 = vrot.slane %v325, 2
      %v889 = vrot.slane %v328, 2
      %v890 = vrot.slane %v331, 2
      %v891 = vrot.slane %v334, 2
      %v892 = vrot.slane %v337, 2
      %v893 = vrot.slane %v340, 2
      %v894 = vrot.slane %v343, 2
      %v895 = vrot.slane %v346, 2
      %v896 = vrot.slane %v326, 2
      %v897 = vrot.slane %v329, 2
      %v898 = vrot.slane %v332, 2
      %v899 = vrot.slane %v335, 2
      %v900 = vrot.slane %v338, 2
      %v901 = vrot.slane %v341, 2
      %v902 = vrot.slane %v344, 2
      %v903 = vrot.slane %v347, 2
      %vm904 = vcmp.lt.s32.totalorder %v590, 6
      %v905 = vsel %vm904, %v888, %v896
      %v906 = vsel %vm904, %v889, %v897
      %v907 = vsel %vm904, %v890, %v898
      %v908 = vsel %vm904, %v891, %v899
      %v909 = vsel %vm904, %v892, %v900
      %v910 = vsel %vm904, %v893, %v901
      %v911 = vsel %vm904, %v894, %v902
      %v912 = vsel %vm904, %v895, %v903
      %v913 = vsel %vm904, %v880, %v888
      %v914 = vsel %vm904, %v881, %v889
      %v915 = vsel %vm904, %v882, %v890
      %v916 = vsel %vm904, %v883, %v891
      %v917 = vsel %vm904, %v884, %v892
      %v918 = vsel %vm904, %v885, %v893
      %v919 = vsel %vm904, %v886, %v894
      %v920 = vsel %vm904, %v887, %v895
      %v921 = vsel %vm904, %v896, %v880
      %v922 = vsel %vm904, %v897, %v881
      %v923 = vsel %vm904, %v898, %v882
      %v924 = vsel %vm904, %v899, %v883
      %v925 = vsel %vm904, %v900, %v884
      %v926 = vsel %vm904, %v901, %v885
      %v927 = vsel %vm904, %v902, %v886
      %v928 = vsel %vm904, %v903, %v887
      %v929 = vld [vmem:[#allocation2] sm:$0xff]
      %v930 = vld [vmem:[#allocation2 + $0x8] sm:$0xff]
      %v931 = vld [vmem:[#allocation2 + $0x10] sm:$0xff]
      %v932 = vld [vmem:[#allocation2 + $0x18] sm:$0xff]
      %v933 = vld [vmem:[#allocation2 + $0x20] sm:$0xff]
      %v934 = vld [vmem:[#allocation2 + $0x28] sm:$0xff]
      %v935 = vld [vmem:[#allocation2 + $0x30] sm:$0xff]
      %v936 = vld [vmem:[#allocation2 + $0x38] sm:$0xff]
      %v937 = vld [vmem:[#allocation2 + $0x40] sm:$0xff]
      %v938 = vld [vmem:[#allocation2 + $0x48] sm:$0xff]
      %v939 = vld [vmem:[#allocation2 + $0x50] sm:$0xff]
      %v940 = vld [vmem:[#allocation2 + $0x58] sm:$0xff]
      %v941 = vld [vmem:[#allocation2 + $0x60] sm:$0xff]
      %v942 = vld [vmem:[#allocation2 + $0x68] sm:$0xff]
      %v943 = vld [vmem:[#allocation2 + $0x70] sm:$0xff]
      %v944 = vld [vmem:[#allocation2 + $0x78] sm:$0xff]
      %v945 = vld [vmem:[#allocation2 + $0x80] sm:$0xff]
      %v946 = vld [vmem:[#allocation2 + $0x88] sm:$0xff]
      %v947 = vld [vmem:[#allocation2 + $0x90] sm:$0xff]
      %v948 = vld [vmem:[#allocation2 + $0x98] sm:$0xff]
      %v949 = vld [vmem:[#allocation2 + $0xa0] sm:$0xff]
      %v950 = vld [vmem:[#allocation2 + $0xa8] sm:$0xff]
      %v951 = vld [vmem:[#allocation2 + $0xb0] sm:$0xff]
      %v952 = vld [vmem:[#allocation2 + $0xb8] sm:$0xff]
      %v953 = vlaneseq
      %v954 = vshrl.u32 %v953, 7
      %v955 = vsub.s32 2, %v954
      %v956 = vrot.slane %v321, %v955
      %v957 = vmul.f32 %v913, %v956
      %v958 = vmul.f32 %v905, %v956
      %v959 = vmul.f32 %v921, %v956
      %v960 = vmul.f32 %v914, %v956
      %v961 = vmul.f32 %v906, %v956
      %v962 = vmul.f32 %v922, %v956
      %v963 = vmul.f32 %v915, %v956
      %v964 = vmul.f32 %v907, %v956
      %v965 = vmul.f32 %v923, %v956
      %v966 = vmul.f32 %v916, %v956
      %v967 = vmul.f32 %v908, %v956
      %v968 = vmul.f32 %v924, %v956
      %v969 = vmul.f32 %v917, %v956
      %v970 = vmul.f32 %v909, %v956
      %v971 = vmul.f32 %v925, %v956
      %v972 = vmul.f32 %v918, %v956
      %v973 = vmul.f32 %v910, %v956
      %v974 = vmul.f32 %v926, %v956
      %v975 = vmul.f32 %v919, %v956
      %v976 = vmul.f32 %v911, %v956
      %v977 = vmul.f32 %v927, %v956
      %v978 = vmul.f32 %v920, %v956
      %v979 = vmul.f32 %v912, %v956
      %v980 = vmul.f32 %v928, %v956
      %v981 = vadd.f32 %v929, %v957
      %v982 = vadd.f32 %v930, %v958
      %v983 = vadd.f32 %v931, %v959
      %v984 = vadd.f32 %v932, %v960
      %v985 = vadd.f32 %v933, %v961
      %v986 = vadd.f32 %v934, %v962
      %v987 = vadd.f32 %v935, %v963
      %v988 = vadd.f32 %v936, %v964
      %v989 = vadd.f32 %v937, %v965
      %v990 = vadd.f32 %v938, %v966
      %v991 = vadd.f32 %v939, %v967
      %v992 = vadd.f32 %v940, %v968
      %v993 = vadd.f32 %v941, %v969
      %v994 = vadd.f32 %v942, %v970
      %v995 = vadd.f32 %v943, %v971
      %v996 = vadd.f32 %v944, %v972
      %v997 = vadd.f32 %v945, %v973
      %v998 = vadd.f32 %v946, %v974
      %v999 = vadd.f32 %v947, %v975
      %v1000 = vadd.f32 %v948, %v976
      %v1001 = vadd.f32 %v949, %v977
      %v1002 = vadd.f32 %v950, %v978
      %v1003 = vadd.f32 %v951, %v979
      %v1004 = vadd.f32 %v952, %v980
      %1005 = vst.msk [vmem:[#allocation2] sm:$0xff] %vm376, %v981
      %1006 = vst.msk [vmem:[#allocation2 + $0x8] sm:$0xff] %vm376, %v982
      %1007 = vst.msk [vmem:[#allocation2 + $0x10] sm:$0xff] %vm376, %v983
      %1008 = vst.msk [vmem:[#allocation2 + $0x18] sm:$0xff] %vm376, %v984
      %1009 = vst.msk [vmem:[#allocation2 + $0x20] sm:$0xff] %vm376, %v985
      %1010 = vst.msk [vmem:[#allocation2 + $0x28] sm:$0xff] %vm376, %v986
      %1011 = vst.msk [vmem:[#allocation2 + $0x30] sm:$0xff] %vm376, %v987
      %1012 = vst.msk [vmem:[#allocation2 + $0x38] sm:$0xff] %vm376, %v988
      %1013 = vst.msk [vmem:[#allocation2 + $0x40] sm:$0xff] %vm376, %v989
      %1014 = vst.msk [vmem:[#allocation2 + $0x48] sm:$0xff] %vm376, %v990
      %1015 = vst.msk [vmem:[#allocation2 + $0x50] sm:$0xff] %vm376, %v991
      %1016 = vst.msk [vmem:[#allocation2 + $0x58] sm:$0xff] %vm376, %v992
      %1017 = vst.msk [vmem:[#allocation2 + $0x60] sm:$0xff] %vm376, %v993
      %1018 = vst.msk [vmem:[#allocation2 + $0x68] sm:$0xff] %vm376, %v994
      %1019 = vst.msk [vmem:[#allocation2 + $0x70] sm:$0xff] %vm376, %v995
      %1020 = vst.msk [vmem:[#allocation2 + $0x78] sm:$0xff] %vm376, %v996
      %1021 = vst.msk [vmem:[#allocation2 + $0x80] sm:$0xff] %vm376, %v997
      %1022 = vst.msk [vmem:[#allocation2 + $0x88] sm:$0xff] %vm376, %v998
      %1023 = vst.msk [vmem:[#allocation2 + $0x90] sm:$0xff] %vm376, %v999
      %1024 = vst.msk [vmem:[#allocation2 + $0x98] sm:$0xff] %vm376, %v1000
      %1025 = vst.msk [vmem:[#allocation2 + $0xa0] sm:$0xff] %vm376, %v1001
      %1026 = vst.msk [vmem:[#allocation2 + $0xa8] sm:$0xff] %vm376, %v1002
      %1027 = vst.msk [vmem:[#allocation2 + $0xb0] sm:$0xff] %vm376, %v1003
      %1028 = vst.msk [vmem:[#allocation2 + $0xb8] sm:$0xff] %vm376, %v1004
      %v1029 = vld [vmem:[#allocation2] sm:$0xff]
      %v1030 = vld [vmem:[#allocation2 + $0x8] sm:$0xff]
      %v1031 = vld [vmem:[#allocation2 + $0x10] sm:$0xff]
      %v1032 = vld [vmem:[#allocation2 + $0x18] sm:$0xff]
      %v1033 = vld [vmem:[#allocation2 + $0x20] sm:$0xff]
      %v1034 = vld [vmem:[#allocation2 + $0x28] sm:$0xff]
      %v1035 = vld [vmem:[#allocation2 + $0x30] sm:$0xff]
      %v1036 = vld [vmem:[#allocation2 + $0x38] sm:$0xff]
      %v1037 = vld [vmem:[#allocation2 + $0x40] sm:$0xff]
      %v1038 = vld [vmem:[#allocation2 + $0x48] sm:$0xff]
      %v1039 = vld [vmem:[#allocation2 + $0x50] sm:$0xff]
      %v1040 = vld [vmem:[#allocation2 + $0x58] sm:$0xff]
      %v1041 = vld [vmem:[#allocation2 + $0x60] sm:$0xff]
      %v1042 = vld [vmem:[#allocation2 + $0x68] sm:$0xff]
      %v1043 = vld [vmem:[#allocation2 + $0x70] sm:$0xff]
      %v1044 = vld [vmem:[#allocation2 + $0x78] sm:$0xff]
      %v1045 = vld [vmem:[#allocation2 + $0x80] sm:$0xff]
      %v1046 = vld [vmem:[#allocation2 + $0x88] sm:$0xff]
      %v1047 = vld [vmem:[#allocation2 + $0x90] sm:$0xff]
      %v1048 = vld [vmem:[#allocation2 + $0x98] sm:$0xff]
      %v1049 = vld [vmem:[#allocation2 + $0xa0] sm:$0xff]
      %v1050 = vlaneseq
      %v1051 = vshrl.u32 %v1050, 7
      %v1052 = vsub.s32 2, %v1051
      %v1053 = vrot.slane %v322, %v1052
      %v1054 = vmul.f32 %v914, %v1053
      %v1055 = vmul.f32 %v906, %v1053
      %v1056 = vmul.f32 %v922, %v1053
      %v1057 = vmul.f32 %v915, %v1053
      %v1058 = vmul.f32 %v907, %v1053
      %v1059 = vmul.f32 %v923, %v1053
      %v1060 = vmul.f32 %v916, %v1053
      %v1061 = vmul.f32 %v908, %v1053
      %v1062 = vmul.f32 %v924, %v1053
      %v1063 = vmul.f32 %v917, %v1053
      %v1064 = vmul.f32 %v909, %v1053
      %v1065 = vmul.f32 %v925, %v1053
      %v1066 = vmul.f32 %v918, %v1053
      %v1067 = vmul.f32 %v910, %v1053
      %v1068 = vmul.f32 %v926, %v1053
      %v1069 = vmul.f32 %v919, %v1053
      %v1070 = vmul.f32 %v911, %v1053
      %v1071 = vmul.f32 %v927, %v1053
      %v1072 = vmul.f32 %v920, %v1053
      %v1073 = vmul.f32 %v912, %v1053
      %v1074 = vmul.f32 %v928, %v1053
      %v1075 = vadd.f32 %v1029, %v1054
      %v1076 = vadd.f32 %v1030, %v1055
      %v1077 = vadd.f32 %v1031, %v1056
      %v1078 = vadd.f32 %v1032, %v1057
      %v1079 = vadd.f32 %v1033, %v1058
      %v1080 = vadd.f32 %v1034, %v1059
      %v1081 = vadd.f32 %v1035, %v1060
      %v1082 = vadd.f32 %v1036, %v1061
      %v1083 = vadd.f32 %v1037, %v1062
      %v1084 = vadd.f32 %v1038, %v1063
      %v1085 = vadd.f32 %v1039, %v1064
      %v1086 = vadd.f32 %v1040, %v1065
      %v1087 = vadd.f32 %v1041, %v1066
      %v1088 = vadd.f32 %v1042, %v1067
      %v1089 = vadd.f32 %v1043, %v1068
      %v1090 = vadd.f32 %v1044, %v1069
      %v1091 = vadd.f32 %v1045, %v1070
      %v1092 = vadd.f32 %v1046, %v1071
      %v1093 = vadd.f32 %v1047, %v1072
      %v1094 = vadd.f32 %v1048, %v1073
      %v1095 = vadd.f32 %v1049, %v1074
      %1096 = vst.msk [vmem:[#allocation2] sm:$0xff] %vm376, %v1075
      %1097 = vst.msk [vmem:[#allocation2 + $0x8] sm:$0xff] %vm376, %v1076
      %1098 = vst.msk [vmem:[#allocation2 + $0x10] sm:$0xff] %vm376, %v1077
      %1099 = vst.msk [vmem:[#allocation2 + $0x18] sm:$0xff] %vm376, %v1078
      %1100 = vst.msk [vmem:[#allocation2 + $0x20] sm:$0xff] %vm376, %v1079
      %1101 = vst.msk [vmem:[#allocation2 + $0x28] sm:$0xff] %vm376, %v1080
      %1102 = vst.msk [vmem:[#allocation2 + $0x30] sm:$0xff] %vm376, %v1081
      %1103 = vst.msk [vmem:[#allocation2 + $0x38] sm:$0xff] %vm376, %v1082
      %1104 = vst.msk [vmem:[#allocation2 + $0x40] sm:$0xff] %vm376, %v1083
      %1105 = vst.msk [vmem:[#allocation2 + $0x48] sm:$0xff] %vm376, %v1084
      %1106 = vst.msk [vmem:[#allocation2 + $0x50] sm:$0xff] %vm376, %v1085
      %1107 = vst.msk [vmem:[#allocation2 + $0x58] sm:$0xff] %vm376, %v1086
      %1108 = vst.msk [vmem:[#allocation2 + $0x60] sm:$0xff] %vm376, %v1087
      %1109 = vst.msk [vmem:[#allocation2 + $0x68] sm:$0xff] %vm376, %v1088
      %1110 = vst.msk [vmem:[#allocation2 + $0x70] sm:$0xff] %vm376, %v1089
      %1111 = vst.msk [vmem:[#allocation2 + $0x78] sm:$0xff] %vm376, %v1090
      %1112 = vst.msk [vmem:[#allocation2 + $0x80] sm:$0xff] %vm376, %v1091
      %1113 = vst.msk [vmem:[#allocation2 + $0x88] sm:$0xff] %vm376, %v1092
      %1114 = vst.msk [vmem:[#allocation2 + $0x90] sm:$0xff] %vm376, %v1093
      %1115 = vst.msk [vmem:[#allocation2 + $0x98] sm:$0xff] %vm376, %v1094
      %1116 = vst.msk [vmem:[#allocation2 + $0xa0] sm:$0xff] %vm376, %v1095
      %v1117 = vld [vmem:[#allocation2] sm:$0xff]
      %v1118 = vld [vmem:[#allocation2 + $0x8] sm:$0xff]
      %v1119 = vld [vmem:[#allocation2 + $0x10] sm:$0xff]
      %v1120 = vld [vmem:[#allocation2 + $0x18] sm:$0xff]
      %v1121 = vld [vmem:[#allocation2 + $0x20] sm:$0xff]
      %v1122 = vld [vmem:[#allocation2 + $0x28] sm:$0xff]
      %v1123 = vld [vmem:[#allocation2 + $0x30] sm:$0xff]
      %v1124 = vld [vmem:[#allocation2 + $0x38] sm:$0xff]
      %v1125 = vld [vmem:[#allocation2 + $0x40] sm:$0xff]
      %v1126 = vld [vmem:[#allocation2 + $0x48] sm:$0xff]
      %v1127 = vld [vmem:[#allocation2 + $0x50] sm:$0xff]
      %v1128 = vld [vmem:[#allocation2 + $0x58] sm:$0xff]
      %v1129 = vld [vmem:[#allocation2 + $0x60] sm:$0xff]
      %v1130 = vld [vmem:[#allocation2 + $0x68] sm:$0xff]
      %v1131 = vld [vmem:[#allocation2 + $0x70] sm:$0xff]
      %v1132 = vld [vmem:[#allocation2 + $0x78] sm:$0xff]
      %v1133 = vld [vmem:[#allocation2 + $0x80] sm:$0xff]
      %v1134 = vld [vmem:[#allocation2 + $0x88] sm:$0xff]
      %v1135 = vlaneseq
      %v1136 = vshrl.u32 %v1135, 7
      %v1137 = vsub.s32 2, %v1136
      %v1138 = vrot.slane %v323, %v1137
      %v1139 = vmul.f32 %v915, %v1138
      %v1140 = vmul.f32 %v907, %v1138
      %v1141 = vmul.f32 %v923, %v1138
      %v1142 = vmul.f32 %v916, %v1138
      %v1143 = vmul.f32 %v908, %v1138
      %v1144 = vmul.f32 %v924, %v1138
      %v1145 = vmul.f32 %v917, %v1138
      %v1146 = vmul.f32 %v909, %v1138
      %v1147 = vmul.f32 %v925, %v1138
      %v1148 = vmul.f32 %v918, %v1138
      %v1149 = vmul.f32 %v910, %v1138
      %v1150 = vmul.f32 %v926, %v1138
      %v1151 = vmul.f32 %v919, %v1138
      %v1152 = vmul.f32 %v911, %v1138
      %v1153 = vmul.f32 %v927, %v1138
      %v1154 = vmul.f32 %v920, %v1138
      %v1155 = vmul.f32 %v912, %v1138
      %v1156 = vmul.f32 %v928, %v1138
      %v1157 = vadd.f32 %v1117, %v1139
      %v1158 = vadd.f32 %v1118, %v1140
      %v1159 = vadd.f32 %v1119, %v1141
      %v1160 = vadd.f32 %v1120, %v1142
      %v1161 = vadd.f32 %v1121, %v1143
      %v1162 = vadd.f32 %v1122, %v1144
      %v1163 = vadd.f32 %v1123, %v1145
      %v1164 = vadd.f32 %v1124, %v1146
      %v1165 = vadd.f32 %v1125, %v1147
      %v1166 = vadd.f32 %v1126, %v1148
      %v1167 = vadd.f32 %v1127, %v1149
      %v1168 = vadd.f32 %v1128, %v1150
      %v1169 = vadd.f32 %v1129, %v1151
      %v1170 = vadd.f32 %v1130, %v1152
      %v1171 = vadd.f32 %v1131, %v1153
      %v1172 = vadd.f32 %v1132, %v1154
      %v1173 = vadd.f32 %v1133, %v1155
      %v1174 = vadd.f32 %v1134, %v1156
      %1175 = vst.msk [vmem:[#allocation2] sm:$0xff] %vm376, %v1157
      %1176 = vst.msk [vmem:[#allocation2 + $0x8] sm:$0xff] %vm376, %v1158
      %1177 = vst.msk [vmem:[#allocation2 + $0x10] sm:$0xff] %vm376, %v1159
      %1178 = vst.msk [vmem:[#allocation2 + $0x18] sm:$0xff] %vm376, %v1160
      %1179 = vst.msk [vmem:[#allocation2 + $0x20] sm:$0xff] %vm376, %v1161
      %1180 = vst.msk [vmem:[#allocation2 + $0x28] sm:$0xff] %vm376, %v1162
      %1181 = vst.msk [vmem:[#allocation2 + $0x30] sm:$0xff] %vm376, %v1163
      %1182 = vst.msk [vmem:[#allocation2 + $0x38] sm:$0xff] %vm376, %v1164
      %1183 = vst.msk [vmem:[#allocation2 + $0x40] sm:$0xff] %vm376, %v1165
      %1184 = vst.msk [vmem:[#allocation2 + $0x48] sm:$0xff] %vm376, %v1166
      %1185 = vst.msk [vmem:[#allocation2 + $0x50] sm:$0xff] %vm376, %v1167
      %1186 = vst.msk [vmem:[#allocation2 + $0x58] sm:$0xff] %vm376, %v1168
      %1187 = vst.msk [vmem:[#allocation2 + $0x60] sm:$0xff] %vm376, %v1169
      %1188 = vst.msk [vmem:[#allocation2 + $0x68] sm:$0xff] %vm376, %v1170
      %1189 = vst.msk [vmem:[#allocation2 + $0x70] sm:$0xff] %vm376, %v1171
      %1190 = vst.msk [vmem:[#allocation2 + $0x78] sm:$0xff] %vm376, %v1172
      %1191 = vst.msk [vmem:[#allocation2 + $0x80] sm:$0xff] %vm376, %v1173
      %1192 = vst.msk [vmem:[#allocation2 + $0x88] sm:$0xff] %vm376, %v1174
      %v1193 = vld [vmem:[%s305] sm:$0xff]
      %v1194 = vld [vmem:[%s305 + $0x8] sm:$0xff]
      %v1195 = vld [vmem:[%s305 + $0x10] sm:$0xff]
      %v1196 = vld [vmem:[%s305 + $0x18] sm:$0xff]
      %v1197 = vld [vmem:[%s305 + $0x20] sm:$0xff]
      %v1198 = vld [vmem:[%s305 + $0x28] sm:$0xff]
      %s1199 = scalar_lea.vmem [#allocation2], 168
      %v1200 = vld [vmem:[%s1199] sm:$0xff]
      %v1201 = vld [vmem:[%s1199 + $0x8] sm:$0xff]
      %v1202 = vld [vmem:[%s1199 + $0x10] sm:$0xff]
      %v1203 = vmul.f32 %v1193, %v425
      %v1204 = vmul.f32 %v1194, %v425
      %v1205 = vmul.f32 %v1195, %v425
      %v1206 = vadd.f32 %v1200, %v1203
      %v1207 = vadd.f32 %v1201, %v1204
      %v1208 = vadd.f32 %v1202, %v1205
      %1209 = vst.msk [vmem:[%s1199] sm:$0xff] %vm376, %v1206
      %1210 = vst.msk [vmem:[%s1199 + $0x8] sm:$0xff] %vm376, %v1207
      %1211 = vst.msk [vmem:[%s1199 + $0x10] sm:$0xff] %vm376, %v1208
      %s1212 = scalar_lea.vmem [#allocation2], 144
      %v1213 = vld [vmem:[%s1212] sm:$0xff]
      %v1214 = vld [vmem:[%s1212 + $0x8] sm:$0xff]
      %v1215 = vld [vmem:[%s1212 + $0x10] sm:$0xff]
      %v1216 = vld [vmem:[%s1212 + $0x18] sm:$0xff]
      %v1217 = vld [vmem:[%s1212 + $0x20] sm:$0xff]
      %v1218 = vld [vmem:[%s1212 + $0x28] sm:$0xff]
      %v1219 = vmul.f32 %v1193, %v510
      %v1220 = vmul.f32 %v1194, %v510
      %v1221 = vmul.f32 %v1195, %v510
      %v1222 = vmul.f32 %v1196, %v510
      %v1223 = vmul.f32 %v1197, %v510
      %v1224 = vmul.f32 %v1198, %v510
      %v1225 = vadd.f32 %v1213, %v1219
      %v1226 = vadd.f32 %v1214, %v1220
      %v1227 = vadd.f32 %v1215, %v1221
      %v1228 = vadd.f32 %v1216, %v1222
      %v1229 = vadd.f32 %v1217, %v1223
      %v1230 = vadd.f32 %v1218, %v1224
      %1231 = vst.msk [vmem:[%s1212] sm:$0xff] %vm376, %v1225
      %1232 = vst.msk [vmem:[%s1212 + $0x8] sm:$0xff] %vm376, %v1226
      %1233 = vst.msk [vmem:[%s1212 + $0x10] sm:$0xff] %vm376, %v1227
      %1234 = vst.msk [vmem:[%s1212 + $0x18] sm:$0xff] %vm376, %v1228
      %1235 = vst.msk [vmem:[%s1212 + $0x20] sm:$0xff] %vm376, %v1229
      %1236 = vst.msk [vmem:[%s1212 + $0x28] sm:$0xff] %vm376, %v1230
      %v1237 = vrot.slane %v1193, 1
      %v1238 = vrot.slane %v1196, 1
      %v1239 = vrot.slane %v1194, 1
      %v1240 = vrot.slane %v1197, 1
      %v1241 = vrot.slane %v1195, 1
      %v1242 = vrot.slane %v1198, 1
      %v1243 = vsel %vm591, %v1239, %v1241
      %v1244 = vsel %vm591, %v1240, %v1242
      %v1245 = vsel %vm591, %v1237, %v1239
      %v1246 = vsel %vm591, %v1238, %v1240
      %v1247 = vsel %vm591, %v1241, %v1237
      %v1248 = vsel %vm591, %v1242, %v1238
      %v1249 = vld [vmem:[%s1199] sm:$0xff]
      %v1250 = vld [vmem:[%s1199 + $0x8] sm:$0xff]
      %v1251 = vld [vmem:[%s1199 + $0x10] sm:$0xff]
      %v1252 = vmul.f32 %v1245, %v740
      %v1253 = vmul.f32 %v1243, %v740
      %v1254 = vmul.f32 %v1247, %v740
      %v1255 = vadd.f32 %v1249, %v1252
      %v1256 = vadd.f32 %v1250, %v1253
      %v1257 = vadd.f32 %v1251, %v1254
      %1258 = vst.msk [vmem:[%s1199] sm:$0xff] %vm376, %v1255
      %1259 = vst.msk [vmem:[%s1199 + $0x8] sm:$0xff] %vm376, %v1256
      %1260 = vst.msk [vmem:[%s1199 + $0x10] sm:$0xff] %vm376, %v1257
      %v1261 = vld [vmem:[%s1212] sm:$0xff]
      %v1262 = vld [vmem:[%s1212 + $0x8] sm:$0xff]
      %v1263 = vld [vmem:[%s1212 + $0x10] sm:$0xff]
      %v1264 = vld [vmem:[%s1212 + $0x18] sm:$0xff]
      %v1265 = vld [vmem:[%s1212 + $0x20] sm:$0xff]
      %v1266 = vld [vmem:[%s1212 + $0x28] sm:$0xff]
      %v1267 = vmul.f32 %v1245, %v825
      %v1268 = vmul.f32 %v1243, %v825
      %v1269 = vmul.f32 %v1247, %v825
      %v1270 = vmul.f32 %v1246, %v825
      %v1271 = vmul.f32 %v1244, %v825
      %v1272 = vmul.f32 %v1248, %v825
      %v1273 = vadd.f32 %v1261, %v1267
      %v1274 = vadd.f32 %v1262, %v1268
      %v1275 = vadd.f32 %v1263, %v1269
      %v1276 = vadd.f32 %v1264, %v1270
      %v1277 = vadd.f32 %v1265, %v1271
      %v1278 = vadd.f32 %v1266, %v1272
      %1279 = vst.msk [vmem:[%s1212] sm:$0xff] %vm376, %v1273
      %1280 = vst.msk [vmem:[%s1212 + $0x8] sm:$0xff] %vm376, %v1274
      %1281 = vst.msk [vmem:[%s1212 + $0x10] sm:$0xff] %vm376, %v1275
      %1282 = vst.msk [vmem:[%s1212 + $0x18] sm:$0xff] %vm376, %v1276
      %1283 = vst.msk [vmem:[%s1212 + $0x20] sm:$0xff] %vm376, %v1277
      %1284 = vst.msk [vmem:[%s1212 + $0x28] sm:$0xff] %vm376, %v1278
      %v1285 = vrot.slane %v1193, 2
      %v1286 = vrot.slane %v1196, 2
      %v1287 = vrot.slane %v1194, 2
      %v1288 = vrot.slane %v1197, 2
      %v1289 = vrot.slane %v1195, 2
      %v1290 = vrot.slane %v1198, 2
      %v1291 = vsel %vm904, %v1287, %v1289
      %v1292 = vsel %vm904, %v1288, %v1290
      %v1293 = vsel %vm904, %v1285, %v1287
      %v1294 = vsel %vm904, %v1286, %v1288
      %v1295 = vsel %vm904, %v1289, %v1285
      %v1296 = vsel %vm904, %v1290, %v1286
      %v1297 = vld [vmem:[%s1199] sm:$0xff]
      %v1298 = vld [vmem:[%s1199 + $0x8] sm:$0xff]
      %v1299 = vld [vmem:[%s1199 + $0x10] sm:$0xff]
      %v1300 = vmul.f32 %v1293, %v1053
      %v1301 = vmul.f32 %v1291, %v1053
      %v1302 = vmul.f32 %v1295, %v1053
      %v1303 = vadd.f32 %v1297, %v1300
      %v1304 = vadd.f32 %v1298, %v1301
      %v1305 = vadd.f32 %v1299, %v1302
      %1306 = vst.msk [vmem:[%s1199] sm:$0xff] %vm376, %v1303
      %1307 = vst.msk [vmem:[%s1199 + $0x8] sm:$0xff] %vm376, %v1304
      %1308 = vst.msk [vmem:[%s1199 + $0x10] sm:$0xff] %vm376, %v1305
      %v1309 = vld [vmem:[%s1212] sm:$0xff]
      %v1310 = vld [vmem:[%s1212 + $0x8] sm:$0xff]
      %v1311 = vld [vmem:[%s1212 + $0x10] sm:$0xff]
      %v1312 = vld [vmem:[%s1212 + $0x18] sm:$0xff]
      %v1313 = vld [vmem:[%s1212 + $0x20] sm:$0xff]
      %v1314 = vld [vmem:[%s1212 + $0x28] sm:$0xff]
      %v1315 = vmul.f32 %v1293, %v1138
      %v1316 = vmul.f32 %v1291, %v1138
      %v1317 = vmul.f32 %v1295, %v1138
      %v1318 = vmul.f32 %v1294, %v1138
      %v1319 = vmul.f32 %v1292, %v1138
      %v1320 = vmul.f32 %v1296, %v1138
      %v1321 = vadd.f32 %v1309, %v1315
      %v1322 = vadd.f32 %v1310, %v1316
      %v1323 = vadd.f32 %v1311, %v1317
      %v1324 = vadd.f32 %v1312, %v1318
      %v1325 = vadd.f32 %v1313, %v1319
      %v1326 = vadd.f32 %v1314, %v1320
      %1327 = vst.msk [vmem:[%s1212] sm:$0xff] %vm376, %v1321
      %1328 = vst.msk [vmem:[%s1212 + $0x8] sm:$0xff] %vm376, %v1322
      %1329 = vst.msk [vmem:[%s1212 + $0x10] sm:$0xff] %vm376, %v1323
      %1330 = vst.msk [vmem:[%s1212 + $0x18] sm:$0xff] %vm376, %v1324
      %1331 = vst.msk [vmem:[%s1212 + $0x20] sm:$0xff] %vm376, %v1325
      %1332 = vst.msk [vmem:[%s1212 + $0x28] sm:$0xff] %vm376, %v1326
      %v1333 = vld [vmem:[%s3] sm:$0xf]
      %v1334 = vpack.c.bf16 %v1333, %v1333
      %v1335 = vld [vmem:[#allocation2] sm:$0xff]
      %v1336 = vld [vmem:[#allocation2 + $0x8] sm:$0xff]
      %v1337 = vld [vmem:[#allocation2 + $0x18] sm:$0xff]
      %v1338 = vld [vmem:[#allocation2 + $0x20] sm:$0xff]
      %v1339 = vld [vmem:[#allocation2 + $0x30] sm:$0xff]
      %v1340 = vld [vmem:[#allocation2 + $0x38] sm:$0xff]
      %v1341 = vld [vmem:[#allocation2 + $0x48] sm:$0xff]
      %v1342 = vld [vmem:[#allocation2 + $0x50] sm:$0xff]
      %v1343 = vld [vmem:[#allocation2 + $0x60] sm:$0xff]
      %v1344 = vld [vmem:[#allocation2 + $0x68] sm:$0xff]
      %v1345 = vld [vmem:[#allocation2 + $0x78] sm:$0xff]
      %v1346 = vld [vmem:[#allocation2 + $0x80] sm:$0xff]
      %v1347 = vld [vmem:[#allocation2 + $0x90] sm:$0xff]
      %v1348 = vld [vmem:[#allocation2 + $0x98] sm:$0xff]
      %v1349 = vld [vmem:[#allocation2 + $0xa8] sm:$0xff]
      %v1350 = vld [vmem:[#allocation2 + $0xb0] sm:$0xff]
      %v1351 = vpack.c.bf16 %v1336, %v1335
      %v1352 = vpack.c.bf16 %v1338, %v1337
      %v1353 = vpack.c.bf16 %v1340, %v1339
      %v1354 = vpack.c.bf16 %v1342, %v1341
      %v1355 = vpack.c.bf16 %v1344, %v1343
      %v1356 = vpack.c.bf16 %v1346, %v1345
      %v1357 = vpack.c.bf16 %v1348, %v1347
      %v1358 = vpack.c.bf16 %v1350, %v1349
      %v1360 = vsel %vm376, %v1351, 0
      %v1363 = vsel %vm376, %v1352, 0
      %v1366 = vsel %vm376, %v1353, 0
      %v1369 = vsel %vm376, %v1354, 0
      %v1372 = vsel %vm376, %v1355, 0
      %v1375 = vsel %vm376, %v1356, 0
      %v1378 = vsel %vm376, %v1357, 0
      %v1381 = vsel %vm376, %v1358, 0
      %vm1383 = vcmask 1041408
      %v1385 = vsel %vm1383, %v1334, 0
      %1387 = vmatprep.subr.bf16.mxu0 0
      %1388 = vmatpush1.bf16.msra.mxu0 0
      %1389 = vmatprep.subr.bf16.mxu0 0
      %1390 = vmatpush1.bf16.msra.mxu0 0
      %1391 = vmatprep.subr.bf16.mxu0 0
      %1392 = vmatpush1.bf16.msra.mxu0 0
      %1393 = vmatprep.subr.bf16.mxu0 0
      %1394 = vmatpush1.bf16.msra.mxu0 0
      %1395 = vmatprep.subr.bf16.mxu0 0
      %1396 = vmatpush1.bf16.msra.mxu0 0
      %1397 = vmatprep.subr.bf16.mxu0 0
      %1398 = vmatpush1.bf16.msra.mxu0 0
      %1399 = vmatprep.subr.bf16.mxu0 0
      %1400 = vmatpush1.bf16.msra.mxu0 0
      %1401 = vmatprep.subr.bf16.mxu0 0
      %1402 = vmatpush1.bf16.msra.mxu0 %v1385
      %1403 = vmatprep.subr.bf16.mxu0 0
      %1404 = vmatpush2.bf16.msra.mxu0 0
      %1405 = vmatprep.subr.bf16.mxu0 0
      %1406 = vmatpush2.bf16.msra.mxu0 0
      %1407 = vmatprep.subr.bf16.mxu0 0
      %1408 = vmatpush2.bf16.msra.mxu0 0
      %1409 = vmatprep.subr.bf16.mxu0 0
      %1410 = vmatpush2.bf16.msra.mxu0 0
      %1411 = vmatprep.subr.bf16.mxu0 0
      %1412 = vmatpush2.bf16.msra.mxu0 0
      %1413 = vmatprep.subr.bf16.mxu0 0
      %1414 = vmatpush2.bf16.msra.mxu0 0
      %1415 = vmatprep.subr.bf16.mxu0 0
      %1416 = vmatpush2.bf16.msra.mxu0 0
      %1417 = vmatprep.subr.bf16.mxu0 0
      %1418 = vmatpush2.bf16.msra.mxu0 0
      %1419 = vmatprep.mubr.bf16.mxu0 0
      %1420 = vmatmul.mubr.bf16.gmra.mxu0 %v1360
      %v1421 = vpop.f32.mrf.mxu0
      %v1422 = vadd.f32 0.0, %v1421
      %v1423 = vpop.f32.mrf.mxu0
      %v1424 = vpop.f32.mrf.mxu0
      %v1425 = vadd.f32 0.0, %v1424
      %v1426 = vpop.f32.mrf.mxu0
      %1427 = vmatprep.mubr.bf16.mxu0 0
      %1428 = vmatmul.mubr.bf16.gmra.mxu0 %v1363
      %v1429 = vpop.f32.mrf.mxu0
      %v1430 = vadd.f32 0.0, %v1429
      %v1431 = vpop.f32.mrf.mxu0
      %v1432 = vpop.f32.mrf.mxu0
      %v1433 = vadd.f32 0.0, %v1432
      %v1434 = vpop.f32.mrf.mxu0
      %1435 = vmatprep.mubr.bf16.mxu0 0
      %1436 = vmatmul.mubr.bf16.gmra.mxu0 %v1366
      %v1437 = vpop.f32.mrf.mxu0
      %v1438 = vadd.f32 0.0, %v1437
      %v1439 = vpop.f32.mrf.mxu0
      %v1440 = vpop.f32.mrf.mxu0
      %v1441 = vadd.f32 0.0, %v1440
      %v1442 = vpop.f32.mrf.mxu0
      %1443 = vmatprep.mubr.bf16.mxu0 0
      %1444 = vmatmul.mubr.bf16.gmra.mxu0 %v1369
      %v1445 = vpop.f32.mrf.mxu0
      %v1446 = vadd.f32 0.0, %v1445
      %v1447 = vpop.f32.mrf.mxu0
      %v1448 = vpop.f32.mrf.mxu0
      %v1449 = vadd.f32 0.0, %v1448
      %v1450 = vpop.f32.mrf.mxu0
      %1451 = vmatprep.mubr.bf16.mxu0 0
      %1452 = vmatmul.mubr.bf16.gmra.mxu0 %v1372
      %v1453 = vpop.f32.mrf.mxu0
      %v1454 = vadd.f32 0.0, %v1453
      %v1455 = vpop.f32.mrf.mxu0
      %v1456 = vpop.f32.mrf.mxu0
      %v1457 = vadd.f32 0.0, %v1456
      %v1458 = vpop.f32.mrf.mxu0
      %1459 = vmatprep.mubr.bf16.mxu0 0
      %1460 = vmatmul.mubr.bf16.gmra.mxu0 %v1375
      %v1461 = vpop.f32.mrf.mxu0
      %v1462 = vadd.f32 0.0, %v1461
      %v1463 = vpop.f32.mrf.mxu0
      %v1464 = vpop.f32.mrf.mxu0
      %v1465 = vadd.f32 0.0, %v1464
      %v1466 = vpop.f32.mrf.mxu0
      %1467 = vmatprep.mubr.bf16.mxu0 0
      %1468 = vmatmul.mubr.bf16.gmra.mxu0 %v1378
      %v1469 = vpop.f32.mrf.mxu0
      %v1470 = vadd.f32 0.0, %v1469
      %v1471 = vpop.f32.mrf.mxu0
      %v1472 = vpop.f32.mrf.mxu0
      %v1473 = vadd.f32 0.0, %v1472
      %v1474 = vpop.f32.mrf.mxu0
      %1475 = vmatprep.mubr.bf16.mxu0 0
      %1476 = vmatmul.mubr.bf16.gmra.mxu0 %v1381
      %v1477 = vpop.f32.mrf.mxu0
      %v1478 = vadd.f32 0.0, %v1477
      %v1479 = vpop.f32.mrf.mxu0
      %v1480 = vpop.f32.mrf.mxu0
      %v1481 = vadd.f32 0.0, %v1480
      %v1482 = vpop.f32.mrf.mxu0
      %1483 = vdwg.mxu0
      %vm1484 = vcmask 64512
      %1485 = vst.msk [vmem:[%s318] sm:$0xff] %vm1484, %v1422
      %1486 = vst.msk [vmem:[%s318 + $0x8] sm:$0xff] %vm1484, %v1425
      %1487 = vst.msk [vmem:[%s318 + $0x10] sm:$0xff] %vm1484, %v1430
      %1488 = vst.msk [vmem:[%s318 + $0x18] sm:$0xff] %vm1484, %v1433
      %1489 = vst.msk [vmem:[%s318 + $0x20] sm:$0xff] %vm1484, %v1438
      %1490 = vst.msk [vmem:[%s318 + $0x28] sm:$0xff] %vm1484, %v1441
      %1491 = vst.msk [vmem:[%s318 + $0x30] sm:$0xff] %vm1484, %v1446
      %1492 = vst.msk [vmem:[%s318 + $0x38] sm:$0xff] %vm1484, %v1449
      %1493 = vst.msk [vmem:[%s318 + $0x40] sm:$0xff] %vm1484, %v1454
      %1494 = vst.msk [vmem:[%s318 + $0x48] sm:$0xff] %vm1484, %v1457
      %1495 = vst.msk [vmem:[%s318 + $0x50] sm:$0xff] %vm1484, %v1462
      %1496 = vst.msk [vmem:[%s318 + $0x58] sm:$0xff] %vm1484, %v1465
      %1497 = vst.msk [vmem:[%s318 + $0x60] sm:$0xff] %vm1484, %v1470
      %1498 = vst.msk [vmem:[%s318 + $0x68] sm:$0xff] %vm1484, %v1473
      %1499 = vst.msk [vmem:[%s318 + $0x70] sm:$0xff] %vm1484, %v1478
      %1500 = vst.msk [vmem:[%s318 + $0x78] sm:$0xff] %vm1484, %v1481
      %s1501 = smul.u32 8, %s20
      %p1502 = scmp.lt.s32.totalorder %s19, 1
      %s1503 = scalar_select %p1502, %s19, 1
      %p1504 = scmp.lt.s32.totalorder %s1501, 15
      %s1505 = scalar_select %p1504, %s1501, 15
      %s1506 = smul.addr %s1505, 2
      %s1507 = smul.addr %s1503, 32
      %s1508 = sadd.s32 %s1506, %s1507
      %s1509 = smul.addr %s1508, 8
      %s1510 = scalar_lea.vmem %s4, %s1509
      // Predicated region
      $region37: #{tpu_custom_call.1} parent=35 // pred_check
        %p1511 = pneg %p149
      $region38: #{tpu_custom_call.1} parent=35 // pred_check_branch
        %1513 = sbr.rel (%p1511) target = $region40
      $region39: #{tpu_custom_call.1} parent=35 // pred_region
        %s1514 = smul.u32 8, %s20
      $region40: #{tpu_custom_call.1} parent=35 // pred_fallthru
        _
    $region36: #{tpu_custom_call.1} parent=5 // pred_fallthru
      _
    %p1515 = scmp.le.s32.totalorder 2, %s10
    // Predicated region
    $region41: #{tpu_custom_call.1} parent=5 // pred_check
      %p1516 = pneg %p1515
    $region42: #{tpu_custom_call.1} parent=5 // pred_check_branch
      %1518 = sbr.rel (%p1516) target = $region44
    $region43: #{tpu_custom_call.1} parent=5 // pred_region
      %s1519 = ssub.s32 %s10, 2
      // Predicated region
      $region45: #{tpu_custom_call.1} parent=43 // pred_check
        %p1520 = pneg %p155
      $region46: #{tpu_custom_call.1} parent=43 // pred_check_branch
        %1522 = sbr.rel (%p1520) target = $region48
      $region47: #{tpu_custom_call.1} parent=43 // pred_region
        %s1523 = smul.u32 8, %s22
        %p1524 = scmp.lt.s32.totalorder %s21, 1
        %s1525 = scalar_select %p1524, %s21, 1
        %p1526 = scmp.lt.s32.totalorder %s1523, 15
        %s1527 = scalar_select %p1526, %s1523, 15
        %s1528 = smul.addr %s1527, 2
        %s1529 = smul.addr %s1525, 32
        %s1530 = sadd.s32 %s1528, %s1529
        %s1531 = smul.addr %s1530, 8
        %s1532 = scalar_lea.vmem %s4, %s1531
      $region48: #{tpu_custom_call.1} parent=43 // pred_fallthru
        _
    $region44: #{tpu_custom_call.1} parent=5 // pred_fallthru
      _
  $region6: #{tpu_custom_call.1} parent=0 // loop_footer
    %s14 = sadd.s32 1, %s10
  $region7: #{tpu_custom_call.1} parent=0 // loop_footer_branch
    %9 = sbr.rel target = $region3
  $region8: #{tpu_custom_call.1} parent=0 // loop_exit
    _

</llo_original>
